<compile_context>
chip_gen: v5e
topology: v5e:2x2
jax: 0.10.0
libtpu: 0.0.40
codegen_flags: <defaults>
</compile_context>

<pallas_src>
import numpy as np
import jax
import jax.numpy as jnp
from jax.experimental import pallas as pl
from jax.experimental.pallas import tpu as pltpu

# ---- small shapes consistent with the module's forward ----
B = 2               # batch
C_IN = 4            # image channels
H = W = 16          # image size
PH = PW = 8         # patch size
NPH, NPW = H // PH, W // PW
NP = NPH * NPW      # patches per image
N = B * NP          # total patches (8)
C_HID = 64          # "ResNetMSA" output channels (64 * 4 * 4 = 1024)
POOL = 4            # AdaptiveAvgPool2d((4, 4))
NPOOL = POOL * POOL                 # 16 pooled positions
LIN_IN = C_HID * NPOOL              # 1024
EMB = 32            # emb_dim
KK = 3 * 3 * C_IN   # im2col contraction size (36)
KK_PAD = 128        # zero-padded contraction (lane-dense DMA; MXU pads anyway)
NPOS = PH * PW      # spatial positions per patch (64)
EPS = 1e-12


def _patch_embed_kernel(cols_ref, wc_ref, bc_ref, pool_ref, wl_ref, bl_ref,
                        g_ref, b_ref, o_ref):
    # cols_ref: (N*NPOS, KK_PAD) im2col of ALL patches (contraction zero-padded)
    # 3x3 conv + bias + ReLU for every spatial position of every patch: one
    # big MXU matmul with M = 512 instead of 8 tiny per-patch ones.
    conv = jnp.dot(cols_ref[...], wc_ref[...],
                   preferred_element_type=jnp.float32)          # (N*NPOS, C_HID)
    conv = jnp.maximum(conv + bc_ref[...], 0.0)

    # AdaptiveAvgPool2d((4,4)) for all patches via a constant block-diagonal
    # pooling matrix; rows are ordered p-major / patch-minor so the linear
    # below can use M=N batched dots without any in-kernel relayout.
    pooled = jnp.dot(pool_ref[...], conv,
                     preferred_element_type=jnp.float32)        # (NPOOL*N, C_HID)

    # Flatten(pos, chan) + Linear(1024 -> EMB): 16 dots of (N,64)x(64,EMB),
    # partial products combined with a shallow pairwise tree (no long serial
    # add chain, no M=1 MXU passes).
    wl = wl_ref[...]                                            # (NPOOL, C_HID, EMB)
    parts = [jnp.dot(pooled[p * N:(p + 1) * N, :], wl[p],
                     preferred_element_type=jnp.float32)
             for p in range(NPOOL)]
    while len(parts) > 1:
        parts = [parts[i] + parts[i + 1] for i in range(0, len(parts), 2)]
    emb = parts[0] + bl_ref[...]                                # (N, EMB)

    # LayerNorm(EMB, eps=1e-12)
    mu = jnp.mean(emb, axis=-1, keepdims=True)
    var = jnp.mean(jnp.square(emb - mu), axis=-1, keepdims=True)
    normed = (emb - mu) * jax.lax.rsqrt(var + EPS)
    # single dense (N, EMB) store for the whole batch of patches
    o_ref[...] = normed * g_ref[...] + b_ref[...]


def _im2col_padded(patches):
    """(N, C, PH, PW) -> (N*NPOS, KK_PAD) for a 3x3 / stride 1 / pad 1 conv."""
    xp = jnp.pad(patches, ((0, 0), (0, 0), (1, 1), (1, 1)))
    cols = jnp.stack([xp[:, :, kh:kh + PH, kw:kw + PW]
                      for kh in range(3) for kw in range(3)], axis=2)  # (N,C,9,PH,PW)
    cols = cols.transpose(0, 3, 4, 1, 2).reshape(N * NPOS, KK)         # (c*9 + k) order
    return jnp.pad(cols, ((0, 0), (0, KK_PAD - KK)))                   # lane-dense


def _pool_matrix_blockdiag():
    """(NPOOL*N, N*NPOS) block-diagonal AdaptiveAvgPool2d((4,4)) matrix.

    Row index = p*N + n (pooled-position major, patch minor); column index =
    n*NPOS + spatial position inside patch n.  Each row averages a 2x2 block
    of the 8x8 feature map of its patch.
    """
    p = np.zeros((NPOOL * N, N * NPOS), np.float32)
    for n in range(N):
        for i in range(POOL):
            for j in range(POOL):
                r = (i * POOL + j) * N + n
                for di in range(2):
                    for dj in range(2):
                        c = n * NPOS + (2 * i + di) * PW + (2 * j + dj)
                        p[r, c] = 0.25
    return jnp.asarray(p)


def patch_embedding(x, w_conv, b_conv, w_lin, b_lin, gamma, beta):
    """x: [B, C, H, W] -> [B, NP, E]"""
    # --- glue: Rearrange 'B C (NPH PH) (NPW PW) -> (B NPH NPW) C PH PW' ---
    patches = (x.reshape(B, C_IN, NPH, PH, NPW, PW)
                 .transpose(0, 2, 4, 1, 3, 5)
                 .reshape(N, C_IN, PH, PW))
    cols = _im2col_padded(patches)                              # (512, 128)

    wc = jnp.pad(w_conv.reshape(C_HID, KK).T,
                 ((0, KK_PAD - KK), (0, 0)))                    # (128, 64), zero rows
    wl3 = w_lin.reshape(NPOOL, C_HID, EMB)                      # (16, 64, EMB)
    pool_mat = _pool_matrix_blockdiag()                         # (128, 512)

    out = pl.pallas_call(
        _patch_embed_kernel,
        out_shape=jax.ShapeDtypeStruct((N, EMB), jnp.float32),
        grid_spec=pltpu.PrefetchScalarGridSpec(
            num_scalar_prefetch=0,
            grid=(1,),                                          # single invocation
            in_specs=[
                pl.BlockSpec((N * NPOS, KK_PAD), lambda i: (0, 0)),      # im2col
                pl.BlockSpec((KK_PAD, C_HID), lambda i: (0, 0)),         # conv W
                pl.BlockSpec((1, C_HID), lambda i: (0, 0)),              # conv b
                pl.BlockSpec((NPOOL * N, N * NPOS), lambda i: (0, 0)),   # pool mat
                pl.BlockSpec((NPOOL, C_HID, EMB), lambda i: (0, 0, 0)),  # lin W
                pl.BlockSpec((1, EMB), lambda i: (0, 0)),                # lin b
                pl.BlockSpec((1, EMB), lambda i: (0, 0)),                # ln gamma
                pl.BlockSpec((1, EMB), lambda i: (0, 0)),                # ln beta
            ],
            out_specs=pl.BlockSpec((N, EMB), lambda i: (0, 0)),
        ),
        compiler_params=pltpu.CompilerParams(
            dimension_semantics=("arbitrary",)),
    )(cols, wc, b_conv.reshape(1, C_HID), pool_mat, wl3,
      b_lin.reshape(1, EMB), gamma.reshape(1, EMB), beta.reshape(1, EMB))

    # --- glue: Rearrange '(B NP) E -> B NP E' ---
    return out.reshape(B, NP, EMB)


def reference(x, w_conv, b_conv, w_lin, b_lin, gamma, beta):
    """Pure-JAX reference with identical semantics (for correctness check)."""
    patches = (x.reshape(B, C_IN, NPH, PH, NPW, PW)
                 .transpose(0, 2, 4, 1, 3, 5)
                 .reshape(N, C_IN, PH, PW))
    conv = jax.lax.conv_general_dilated(
        patches, w_conv, window_strides=(1, 1), padding="SAME",
        dimension_numbers=("NCHW", "OIHW", "NCHW"))
    conv = jnp.maximum(conv + b_conv[None, :, None, None], 0.0)
    pooled = conv.reshape(N, C_HID, POOL, 2, POOL, 2).mean(axis=(3, 5))
    flat = pooled.transpose(0, 2, 3, 1).reshape(N, LIN_IN)      # (pos, chan) order
    emb = flat @ w_lin + b_lin
    mu = emb.mean(-1, keepdims=True)
    var = ((emb - mu) ** 2).mean(-1, keepdims=True)
    out = (emb - mu) / jnp.sqrt(var + EPS) * gamma + beta
    return out.reshape(B, NP, EMB)


if __name__ == "__main__":
    key = jax.random.PRNGKey(0)
    k = jax.random.split(key, 7)
    x = jax.random.normal(k[0], (B, C_IN, H, W), jnp.float32)
    w_conv = 0.10 * jax.random.normal(k[1], (C_HID, C_IN, 3, 3), jnp.float32)
    b_conv = 0.10 * jax.random.normal(k[2], (C_HID,), jnp.float32)
    w_lin = 0.05 * jax.random.normal(k[3], (LIN_IN, EMB), jnp.float32)
    b_lin = 0.05 * jax.random.normal(k[4], (EMB,), jnp.float32)
    gamma = 1.0 + 0.10 * jax.random.normal(k[5], (EMB,), jnp.float32)
    beta = 0.10 * jax.random.normal(k[6], (EMB,), jnp.float32)

    out = jax.jit(patch_embedding)(x, w_conv, b_conv, w_lin, b_lin, gamma, beta)
    out = jax.block_until_ready(out)
    assert out.shape == (B, NP, EMB), out.shape

    ref = reference(x, w_conv, b_conv, w_lin, b_lin, gamma, beta)
    np.testing.assert_allclose(np.asarray(out), np.asarray(ref),
                               rtol=2e-4, atol=2e-4)
    print("KERNEL_OK")
</pallas_src>

<mosaic_0001>
module attributes {stable_mosaic.version = 11 : i64} {
  func.func @_patch_embed_kernel(%arg0: i32, %arg1: memref<512x128xf32, #tpu.memory_space<vmem>>, %arg2: memref<128x64xf32, #tpu.memory_space<vmem>>, %arg3: memref<1x64xf32, #tpu.memory_space<vmem>>, %arg4: memref<128x512xf32, #tpu.memory_space<vmem>>, %arg5: memref<16x64x32xf32, #tpu.memory_space<vmem>>, %arg6: memref<1x32xf32, #tpu.memory_space<vmem>>, %arg7: memref<1x32xf32, #tpu.memory_space<vmem>>, %arg8: memref<1x32xf32, #tpu.memory_space<vmem>>, %arg9: memref<8x32xf32, #tpu.memory_space<vmem>>) attributes {dimension_semantics = [#tpu.dimension_semantics<arbitrary>], iteration_bounds = array<i64: 1>, scalar_prefetch = 0 : i64, scratch_operands = 0 : i64, tpu.core_type = #tpu.core_type<tc>, window_params = [{pipeline_mode = #tpu.pipeline_mode<synchronous>, transform_indices = @transform_0, window_bounds = array<i64: 512, 128>}, {pipeline_mode = #tpu.pipeline_mode<synchronous>, transform_indices = @transform_1, window_bounds = array<i64: 128, 64>}, {pipeline_mode = #tpu.pipeline_mode<synchronous>, transform_indices = @transform_2, window_bounds = array<i64: 1, 64>}, {pipeline_mode = #tpu.pipeline_mode<synchronous>, transform_indices = @transform_3, window_bounds = array<i64: 128, 512>}, {pipeline_mode = #tpu.pipeline_mode<synchronous>, transform_indices = @transform_4, window_bounds = array<i64: 16, 64, 32>}, {pipeline_mode = #tpu.pipeline_mode<synchronous>, transform_indices = @transform_5, window_bounds = array<i64: 1, 32>}, {pipeline_mode = #tpu.pipeline_mode<synchronous>, transform_indices = @transform_6, window_bounds = array<i64: 1, 32>}, {pipeline_mode = #tpu.pipeline_mode<synchronous>, transform_indices = @transform_7, window_bounds = array<i64: 1, 32>}, {pipeline_mode = #tpu.pipeline_mode<synchronous>, transform_indices = @transform_8, window_bounds = array<i64: 8, 32>}]} {
    %c0 = arith.constant 0 : index
    %c0_0 = arith.constant 0 : index
    %0 = vector.load %arg1[%c0, %c0_0] : memref<512x128xf32, #tpu.memory_space<vmem>>, vector<512x128xf32>
    %c0_1 = arith.constant 0 : index
    %c0_2 = arith.constant 0 : index
    %1 = vector.load %arg2[%c0_1, %c0_2] : memref<128x64xf32, #tpu.memory_space<vmem>>, vector<128x64xf32>
    %cst = arith.constant dense<0.000000e+00> : vector<512x64xf32>
    %2 = tpu.matmul %0, %1, %cst {dimension_numbers = #tpu.dot_dimension_numbers<[1], [0], [0], [1], [0, 0, 1, 1], [], []>} : vector<512x128xf32>, vector<128x64xf32>, vector<512x64xf32> -> vector<512x64xf32>
    %c0_3 = arith.constant 0 : index
    %c0_4 = arith.constant 0 : index
    %3 = vector.load %arg3[%c0_3, %c0_4] : memref<1x64xf32, #tpu.memory_space<vmem>>, vector<1x64xf32>
    %4 = vector.broadcast %3 : vector<1x64xf32> to vector<512x64xf32>
    %5 = arith.addf %2, %4 : vector<512x64xf32>
    %cst_5 = arith.constant 0.000000e+00 : f32
    %6 = vector.broadcast %cst_5 : f32 to vector<512x64xf32>
    %7 = arith.maximumf %5, %6 : vector<512x64xf32>
    %c0_6 = arith.constant 0 : index
    %c0_7 = arith.constant 0 : index
    %8 = vector.load %arg4[%c0_6, %c0_7] : memref<128x512xf32, #tpu.memory_space<vmem>>, vector<128x512xf32>
    %cst_8 = arith.constant dense<0.000000e+00> : vector<128x64xf32>
    %9 = tpu.matmul %8, %7, %cst_8 {dimension_numbers = #tpu.dot_dimension_numbers<[1], [0], [0], [1], [0, 0, 1, 1], [], []>} : vector<128x512xf32>, vector<512x64xf32>, vector<128x64xf32> -> vector<128x64xf32>
    %c0_9 = arith.constant 0 : index
    %c0_10 = arith.constant 0 : index
    %c0_11 = arith.constant 0 : index
    %10 = vector.load %arg5[%c0_9, %c0_10, %c0_11] : memref<16x64x32xf32, #tpu.memory_space<vmem>>, vector<16x64x32xf32>
    %11 = vector.extract_strided_slice %9 {offsets = [0, 0], sizes = [8, 64], strides = [1, 1]} : vector<128x64xf32> to vector<8x64xf32>
    %12 = vector.extract_strided_slice %10 {offsets = [0, 0, 0], sizes = [1, 64, 32], strides = [1, 1, 1]} : vector<16x64x32xf32> to vector<1x64x32xf32>
    %13 = vector.shape_cast %12 : vector<1x64x32xf32> to vector<64x32xf32>
    %cst_12 = arith.constant dense<0.000000e+00> : vector<8x32xf32>
    %14 = tpu.matmul %11, %13, %cst_12 {dimension_numbers = #tpu.dot_dimension_numbers<[1], [0], [0], [1], [0, 0, 1, 1], [], []>} : vector<8x64xf32>, vector<64x32xf32>, vector<8x32xf32> -> vector<8x32xf32>
    %15 = vector.extract_strided_slice %9 {offsets = [8, 0], sizes = [8, 64], strides = [1, 1]} : vector<128x64xf32> to vector<8x64xf32>
    %16 = vector.extract_strided_slice %10 {offsets = [1, 0, 0], sizes = [1, 64, 32], strides = [1, 1, 1]} : vector<16x64x32xf32> to vector<1x64x32xf32>
    %17 = vector.shape_cast %16 : vector<1x64x32xf32> to vector<64x32xf32>
    %cst_13 = arith.constant dense<0.000000e+00> : vector<8x32xf32>
    %18 = tpu.matmul %15, %17, %cst_13 {dimension_numbers = #tpu.dot_dimension_numbers<[1], [0], [0], [1], [0, 0, 1, 1], [], []>} : vector<8x64xf32>, vector<64x32xf32>, vector<8x32xf32> -> vector<8x32xf32>
    %19 = vector.extract_strided_slice %9 {offsets = [16, 0], sizes = [8, 64], strides = [1, 1]} : vector<128x64xf32> to vector<8x64xf32>
    %20 = vector.extract_strided_slice %10 {offsets = [2, 0, 0], sizes = [1, 64, 32], strides = [1, 1, 1]} : vector<16x64x32xf32> to vector<1x64x32xf32>
    %21 = vector.shape_cast %20 : vector<1x64x32xf32> to vector<64x32xf32>
    %cst_14 = arith.constant dense<0.000000e+00> : vector<8x32xf32>
    %22 = tpu.matmul %19, %21, %cst_14 {dimension_numbers = #tpu.dot_dimension_numbers<[1], [0], [0], [1], [0, 0, 1, 1], [], []>} : vector<8x64xf32>, vector<64x32xf32>, vector<8x32xf32> -> vector<8x32xf32>
    %23 = vector.extract_strided_slice %9 {offsets = [24, 0], sizes = [8, 64], strides = [1, 1]} : vector<128x64xf32> to vector<8x64xf32>
    %24 = vector.extract_strided_slice %10 {offsets = [3, 0, 0], sizes = [1, 64, 32], strides = [1, 1, 1]} : vector<16x64x32xf32> to vector<1x64x32xf32>
    %25 = vector.shape_cast %24 : vector<1x64x32xf32> to vector<64x32xf32>
    %cst_15 = arith.constant dense<0.000000e+00> : vector<8x32xf32>
    %26 = tpu.matmul %23, %25, %cst_15 {dimension_numbers = #tpu.dot_dimension_numbers<[1], [0], [0], [1], [0, 0, 1, 1], [], []>} : vector<8x64xf32>, vector<64x32xf32>, vector<8x32xf32> -> vector<8x32xf32>
    %27 = vector.extract_strided_slice %9 {offsets = [32, 0], sizes = [8, 64], strides = [1, 1]} : vector<128x64xf32> to vector<8x64xf32>
    %28 = vector.extract_strided_slice %10 {offsets = [4, 0, 0], sizes = [1, 64, 32], strides = [1, 1, 1]} : vector<16x64x32xf32> to vector<1x64x32xf32>
    %29 = vector.shape_cast %28 : vector<1x64x32xf32> to vector<64x32xf32>
    %cst_16 = arith.constant dense<0.000000e+00> : vector<8x32xf32>
    %30 = tpu.matmul %27, %29, %cst_16 {dimension_numbers = #tpu.dot_dimension_numbers<[1], [0], [0], [1], [0, 0, 1, 1], [], []>} : vector<8x64xf32>, vector<64x32xf32>, vector<8x32xf32> -> vector<8x32xf32>
    %31 = vector.extract_strided_slice %9 {offsets = [40, 0], sizes = [8, 64], strides = [1, 1]} : vector<128x64xf32> to vector<8x64xf32>
    %32 = vector.extract_strided_slice %10 {offsets = [5, 0, 0], sizes = [1, 64, 32], strides = [1, 1, 1]} : vector<16x64x32xf32> to vector<1x64x32xf32>
    %33 = vector.shape_cast %32 : vector<1x64x32xf32> to vector<64x32xf32>
    %cst_17 = arith.constant dense<0.000000e+00> : vector<8x32xf32>
    %34 = tpu.matmul %31, %33, %cst_17 {dimension_numbers = #tpu.dot_dimension_numbers<[1], [0], [0], [1], [0, 0, 1, 1], [], []>} : vector<8x64xf32>, vector<64x32xf32>, vector<8x32xf32> -> vector<8x32xf32>
    %35 = vector.extract_strided_slice %9 {offsets = [48, 0], sizes = [8, 64], strides = [1, 1]} : vector<128x64xf32> to vector<8x64xf32>
    %36 = vector.extract_strided_slice %10 {offsets = [6, 0, 0], sizes = [1, 64, 32], strides = [1, 1, 1]} : vector<16x64x32xf32> to vector<1x64x32xf32>
    %37 = vector.shape_cast %36 : vector<1x64x32xf32> to vector<64x32xf32>
    %cst_18 = arith.constant dense<0.000000e+00> : vector<8x32xf32>
    %38 = tpu.matmul %35, %37, %cst_18 {dimension_numbers = #tpu.dot_dimension_numbers<[1], [0], [0], [1], [0, 0, 1, 1], [], []>} : vector<8x64xf32>, vector<64x32xf32>, vector<8x32xf32> -> vector<8x32xf32>
    %39 = vector.extract_strided_slice %9 {offsets = [56, 0], sizes = [8, 64], strides = [1, 1]} : vector<128x64xf32> to vector<8x64xf32>
    %40 = vector.extract_strided_slice %10 {offsets = [7, 0, 0], sizes = [1, 64, 32], strides = [1, 1, 1]} : vector<16x64x32xf32> to vector<1x64x32xf32>
    %41 = vector.shape_cast %40 : vector<1x64x32xf32> to vector<64x32xf32>
    %cst_19 = arith.constant dense<0.000000e+00> : vector<8x32xf32>
    %42 = tpu.matmul %39, %41, %cst_19 {dimension_numbers = #tpu.dot_dimension_numbers<[1], [0], [0], [1], [0, 0, 1, 1], [], []>} : vector<8x64xf32>, vector<64x32xf32>, vector<8x32xf32> -> vector<8x32xf32>
    %43 = vector.extract_strided_slice %9 {offsets = [64, 0], sizes = [8, 64], strides = [1, 1]} : vector<128x64xf32> to vector<8x64xf32>
    %44 = vector.extract_strided_slice %10 {offsets = [8, 0, 0], sizes = [1, 64, 32], strides = [1, 1, 1]} : vector<16x64x32xf32> to vector<1x64x32xf32>
    %45 = vector.shape_cast %44 : vector<1x64x32xf32> to vector<64x32xf32>
    %cst_20 = arith.constant dense<0.000000e+00> : vector<8x32xf32>
    %46 = tpu.matmul %43, %45, %cst_20 {dimension_numbers = #tpu.dot_dimension_numbers<[1], [0], [0], [1], [0, 0, 1, 1], [], []>} : vector<8x64xf32>, vector<64x32xf32>, vector<8x32xf32> -> vector<8x32xf32>
    %47 = vector.extract_strided_slice %9 {offsets = [72, 0], sizes = [8, 64], strides = [1, 1]} : vector<128x64xf32> to vector<8x64xf32>
    %48 = vector.extract_strided_slice %10 {offsets = [9, 0, 0], sizes = [1, 64, 32], strides = [1, 1, 1]} : vector<16x64x32xf32> to vector<1x64x32xf32>
    %49 = vector.shape_cast %48 : vector<1x64x32xf32> to vector<64x32xf32>
    %cst_21 = arith.constant dense<0.000000e+00> : vector<8x32xf32>
    %50 = tpu.matmul %47, %49, %cst_21 {dimension_numbers = #tpu.dot_dimension_numbers<[1], [0], [0], [1], [0, 0, 1, 1], [], []>} : vector<8x64xf32>, vector<64x32xf32>, vector<8x32xf32> -> vector<8x32xf32>
    %51 = vector.extract_strided_slice %9 {offsets = [80, 0], sizes = [8, 64], strides = [1, 1]} : vector<128x64xf32> to vector<8x64xf32>
    %52 = vector.extract_strided_slice %10 {offsets = [10, 0, 0], sizes = [1, 64, 32], strides = [1, 1, 1]} : vector<16x64x32xf32> to vector<1x64x32xf32>
    %53 = vector.shape_cast %52 : vector<1x64x32xf32> to vector<64x32xf32>
    %cst_22 = arith.constant dense<0.000000e+00> : vector<8x32xf32>
    %54 = tpu.matmul %51, %53, %cst_22 {dimension_numbers = #tpu.dot_dimension_numbers<[1], [0], [0], [1], [0, 0, 1, 1], [], []>} : vector<8x64xf32>, vector<64x32xf32>, vector<8x32xf32> -> vector<8x32xf32>
    %55 = vector.extract_strided_slice %9 {offsets = [88, 0], sizes = [8, 64], strides = [1, 1]} : vector<128x64xf32> to vector<8x64xf32>
    %56 = vector.extract_strided_slice %10 {offsets = [11, 0, 0], sizes = [1, 64, 32], strides = [1, 1, 1]} : vector<16x64x32xf32> to vector<1x64x32xf32>
    %57 = vector.shape_cast %56 : vector<1x64x32xf32> to vector<64x32xf32>
    %cst_23 = arith.constant dense<0.000000e+00> : vector<8x32xf32>
    %58 = tpu.matmul %55, %57, %cst_23 {dimension_numbers = #tpu.dot_dimension_numbers<[1], [0], [0], [1], [0, 0, 1, 1], [], []>} : vector<8x64xf32>, vector<64x32xf32>, vector<8x32xf32> -> vector<8x32xf32>
    %59 = vector.extract_strided_slice %9 {offsets = [96, 0], sizes = [8, 64], strides = [1, 1]} : vector<128x64xf32> to vector<8x64xf32>
    %60 = vector.extract_strided_slice %10 {offsets = [12, 0, 0], sizes = [1, 64, 32], strides = [1, 1, 1]} : vector<16x64x32xf32> to vector<1x64x32xf32>
    %61 = vector.shape_cast %60 : vector<1x64x32xf32> to vector<64x32xf32>
    %cst_24 = arith.constant dense<0.000000e+00> : vector<8x32xf32>
    %62 = tpu.matmul %59, %61, %cst_24 {dimension_numbers = #tpu.dot_dimension_numbers<[1], [0], [0], [1], [0, 0, 1, 1], [], []>} : vector<8x64xf32>, vector<64x32xf32>, vector<8x32xf32> -> vector<8x32xf32>
    %63 = vector.extract_strided_slice %9 {offsets = [104, 0], sizes = [8, 64], strides = [1, 1]} : vector<128x64xf32> to vector<8x64xf32>
    %64 = vector.extract_strided_slice %10 {offsets = [13, 0, 0], sizes = [1, 64, 32], strides = [1, 1, 1]} : vector<16x64x32xf32> to vector<1x64x32xf32>
    %65 = vector.shape_cast %64 : vector<1x64x32xf32> to vector<64x32xf32>
    %cst_25 = arith.constant dense<0.000000e+00> : vector<8x32xf32>
    %66 = tpu.matmul %63, %65, %cst_25 {dimension_numbers = #tpu.dot_dimension_numbers<[1], [0], [0], [1], [0, 0, 1, 1], [], []>} : vector<8x64xf32>, vector<64x32xf32>, vector<8x32xf32> -> vector<8x32xf32>
    %67 = vector.extract_strided_slice %9 {offsets = [112, 0], sizes = [8, 64], strides = [1, 1]} : vector<128x64xf32> to vector<8x64xf32>
    %68 = vector.extract_strided_slice %10 {offsets = [14, 0, 0], sizes = [1, 64, 32], strides = [1, 1, 1]} : vector<16x64x32xf32> to vector<1x64x32xf32>
    %69 = vector.shape_cast %68 : vector<1x64x32xf32> to vector<64x32xf32>
    %cst_26 = arith.constant dense<0.000000e+00> : vector<8x32xf32>
    %70 = tpu.matmul %67, %69, %cst_26 {dimension_numbers = #tpu.dot_dimension_numbers<[1], [0], [0], [1], [0, 0, 1, 1], [], []>} : vector<8x64xf32>, vector<64x32xf32>, vector<8x32xf32> -> vector<8x32xf32>
    %71 = vector.extract_strided_slice %9 {offsets = [120, 0], sizes = [8, 64], strides = [1, 1]} : vector<128x64xf32> to vector<8x64xf32>
    %72 = vector.extract_strided_slice %10 {offsets = [15, 0, 0], sizes = [1, 64, 32], strides = [1, 1, 1]} : vector<16x64x32xf32> to vector<1x64x32xf32>
    %73 = vector.shape_cast %72 : vector<1x64x32xf32> to vector<64x32xf32>
    %cst_27 = arith.constant dense<0.000000e+00> : vector<8x32xf32>
    %74 = tpu.matmul %71, %73, %cst_27 {dimension_numbers = #tpu.dot_dimension_numbers<[1], [0], [0], [1], [0, 0, 1, 1], [], []>} : vector<8x64xf32>, vector<64x32xf32>, vector<8x32xf32> -> vector<8x32xf32>
    %75 = arith.addf %14, %18 : vector<8x32xf32>
    %76 = arith.addf %22, %26 : vector<8x32xf32>
    %77 = arith.addf %30, %34 : vector<8x32xf32>
    %78 = arith.addf %38, %42 : vector<8x32xf32>
    %79 = arith.addf %46, %50 : vector<8x32xf32>
    %80 = arith.addf %54, %58 : vector<8x32xf32>
    %81 = arith.addf %62, %66 : vector<8x32xf32>
    %82 = arith.addf %70, %74 : vector<8x32xf32>
    %83 = arith.addf %75, %76 : vector<8x32xf32>
    %84 = arith.addf %77, %78 : vector<8x32xf32>
    %85 = arith.addf %79, %80 : vector<8x32xf32>
    %86 = arith.addf %81, %82 : vector<8x32xf32>
    %87 = arith.addf %83, %84 : vector<8x32xf32>
    %88 = arith.addf %85, %86 : vector<8x32xf32>
    %89 = arith.addf %87, %88 : vector<8x32xf32>
    %c0_28 = arith.constant 0 : index
    %c0_29 = arith.constant 0 : index
    %90 = vector.load %arg6[%c0_28, %c0_29] : memref<1x32xf32, #tpu.memory_space<vmem>>, vector<1x32xf32>
    %91 = vector.broadcast %90 : vector<1x32xf32> to vector<8x32xf32>
    %92 = arith.addf %89, %91 : vector<8x32xf32>
    %cst_30 = arith.constant dense<0.000000e+00> : vector<8xf32>
    %93 = vector.multi_reduction <add>, %92, %cst_30 [1] : vector<8x32xf32> to vector<8xf32>
    %94 = vector.shape_cast %93 : vector<8xf32> to vector<8x1xf32>
    %cst_31 = arith.constant 3.200000e+01 : f32
    %95 = vector.broadcast %cst_31 : f32 to vector<8x1xf32>
    %96 = arith.divf %94, %95 : vector<8x1xf32>
    %97 = vector.broadcast %96 : vector<8x1xf32> to vector<8x32xf32>
    %98 = arith.subf %92, %97 : vector<8x32xf32>
    %99 = arith.mulf %98, %98 : vector<8x32xf32>
    %cst_32 = arith.constant dense<0.000000e+00> : vector<8xf32>
    %100 = vector.multi_reduction <add>, %99, %cst_32 [1] : vector<8x32xf32> to vector<8xf32>
    %101 = vector.shape_cast %100 : vector<8xf32> to vector<8x1xf32>
    %cst_33 = arith.constant 3.200000e+01 : f32
    %102 = vector.broadcast %cst_33 : f32 to vector<8x1xf32>
    %103 = arith.divf %101, %102 : vector<8x1xf32>
    %104 = vector.broadcast %96 : vector<8x1xf32> to vector<8x32xf32>
    %105 = arith.subf %92, %104 : vector<8x32xf32>
    %cst_34 = arith.constant 9.99999996E-13 : f32
    %106 = vector.broadcast %cst_34 : f32 to vector<8x1xf32>
    %107 = arith.addf %103, %106 : vector<8x1xf32>
    %108 = math.rsqrt %107 : vector<8x1xf32>
    %109 = vector.broadcast %108 : vector<8x1xf32> to vector<8x32xf32>
    %110 = arith.mulf %105, %109 : vector<8x32xf32>
    %c0_35 = arith.constant 0 : index
    %c0_36 = arith.constant 0 : index
    %111 = vector.load %arg7[%c0_35, %c0_36] : memref<1x32xf32, #tpu.memory_space<vmem>>, vector<1x32xf32>
    %112 = vector.broadcast %111 : vector<1x32xf32> to vector<8x32xf32>
    %113 = arith.mulf %110, %112 : vector<8x32xf32>
    %c0_37 = arith.constant 0 : index
    %c0_38 = arith.constant 0 : index
    %114 = vector.load %arg8[%c0_37, %c0_38] : memref<1x32xf32, #tpu.memory_space<vmem>>, vector<1x32xf32>
    %115 = vector.broadcast %114 : vector<1x32xf32> to vector<8x32xf32>
    %116 = arith.addf %113, %115 : vector<8x32xf32>
    %c0_39 = arith.constant 0 : index
    %c0_40 = arith.constant 0 : index
    %117 = vector.load %arg9[%c0_39, %c0_40] : memref<8x32xf32, #tpu.memory_space<vmem>>, vector<8x32xf32>
    tpu.vector_store %arg9[%c0_39, %c0_40], %116 {strides = array<i32>} : memref<8x32xf32, #tpu.memory_space<vmem>>, vector<8x32xf32>,
    return
  }
  func.func @transform_0(%arg0: i32) -> (i32, i32) {
    %c0_i32 = arith.constant 0 : i32
    %c0_i32_0 = arith.constant 0 : i32
    %c0_i32_1 = arith.constant 0 : i32
    return %c0_i32, %c0_i32_0 : i32, i32
  }
  func.func @transform_1(%arg0: i32) -> (i32, i32) {
    %c0_i32 = arith.constant 0 : i32
    %c0_i32_0 = arith.constant 0 : i32
    %c0_i32_1 = arith.constant 0 : i32
    return %c0_i32, %c0_i32_0 : i32, i32
  }
  func.func @transform_2(%arg0: i32) -> (i32, i32) {
    %c0_i32 = arith.constant 0 : i32
    %c0_i32_0 = arith.constant 0 : i32
    %c0_i32_1 = arith.constant 0 : i32
    return %c0_i32, %c0_i32_0 : i32, i32
  }
  func.func @transform_3(%arg0: i32) -> (i32, i32) {
    %c0_i32 = arith.constant 0 : i32
    %c0_i32_0 = arith.constant 0 : i32
    %c0_i32_1 = arith.constant 0 : i32
    return %c0_i32, %c0_i32_0 : i32, i32
  }
  func.func @transform_4(%arg0: i32) -> (i32, i32, i32) {
    %c0_i32 = arith.constant 0 : i32
    %c0_i32_0 = arith.constant 0 : i32
    %c0_i32_1 = arith.constant 0 : i32
    %c0_i32_2 = arith.constant 0 : i32
    return %c0_i32, %c0_i32_0, %c0_i32_1 : i32, i32, i32
  }
  func.func @transform_5(%arg0: i32) -> (i32, i32) {
    %c0_i32 = arith.constant 0 : i32
    %c0_i32_0 = arith.constant 0 : i32
    %c0_i32_1 = arith.constant 0 : i32
    return %c0_i32, %c0_i32_0 : i32, i32
  }
  func.func @transform_6(%arg0: i32) -> (i32, i32) {
    %c0_i32 = arith.constant 0 : i32
    %c0_i32_0 = arith.constant 0 : i32
    %c0_i32_1 = arith.constant 0 : i32
    return %c0_i32, %c0_i32_0 : i32, i32
  }
  func.func @transform_7(%arg0: i32) -> (i32, i32) {
    %c0_i32 = arith.constant 0 : i32
    %c0_i32_0 = arith.constant 0 : i32
    %c0_i32_1 = arith.constant 0 : i32
    return %c0_i32, %c0_i32_0 : i32, i32
  }
  func.func @transform_8(%arg0: i32) -> (i32, i32) {
    %c0_i32 = arith.constant 0 : i32
    %c0_i32_0 = arith.constant 0 : i32
    %c0_i32_1 = arith.constant 0 : i32
    return %c0_i32, %c0_i32_0 : i32, i32
  }
}

</mosaic_0001>

<llo_original>
// kernel: patch_embedding.1
$region0: #{patch_embedding.1}
  #allocation0 [shape = 'u32[]', space=smem, size = 0x4, offset = 0x4, fixed_abs, tag = 'smem constant byte address 0x4 - core index']
  #allocation1 [shape = 'u32[72,128]{1,0:T(1,128)}', space=vmem, size = 0x9000, scoped, tag = 'internal scratch']
  %s0 = inlined_call_operand.vmem [shape: f32[512,128], index: 0, kind: input, shape index: {}]
  %s1 = inlined_call_operand.vmem [shape: f32[128,64], index: 1, kind: input, shape index: {}]
  %s2 = inlined_call_operand.vmem [shape: f32[1,64], index: 2, kind: input, shape index: {}]
  %s3 = inlined_call_operand.vmem [shape: f32[128,512], index: 3, kind: input, shape index: {}]
  %s4 = inlined_call_operand.vmem [shape: f32[16,64,32], index: 4, kind: input, shape index: {}]
  %s5 = inlined_call_operand.vmem [shape: f32[1,32], index: 5, kind: input, shape index: {}]
  %s6 = inlined_call_operand.vmem [shape: f32[1,32], index: 6, kind: input, shape index: {}]
  %s7 = inlined_call_operand.vmem [shape: f32[1,32], index: 7, kind: input, shape index: {}]
  %s8 = inlined_call_operand.hbm [shape: f32[8,32], index: 8, kind: output, shape index: {}]
  %s9 = sld [smem:[#allocation0]]
  $region42: #{patch_embedding.1} parent=0
    _
  %s11 = ssub.s32 1, %s9
  %s12 = scalar_select 0, %s11, %s9
  $region1: #{patch_embedding.1} parent=0
    #allocation2 [shape = 'u8[4096]{0}', space=vmem, size = 0x1000, scoped, tag = 'output window, operand 0, single buffered']
    #allocation3 [shape = 's32[1]{0}', space=sflag, size = 0x4, scoped, tag = 'scoped memory for patch_embedding.1']
    %13 = vsyncpa [#allocation3], 0
    // Predicated region
    $region2: #{patch_embedding.1} parent=1 // pred_check
      _
    $region3: #{patch_embedding.1} parent=1 // pred_check_branch
      %15 = sbr.rel (0) target = $region5
    $region4: #{patch_embedding.1} parent=1 // pred_region
      _
    $region5: #{patch_embedding.1} parent=1 // pred_fallthru
      _
    // Predicated region
    $region6: #{patch_embedding.1} parent=1 // pred_check
      _
    $region7: #{patch_embedding.1} parent=1 // pred_check_branch
      %17 = sbr.rel (0) target = $region9
    $region8: #{patch_embedding.1} parent=1 // pred_region
      _
    $region9: #{patch_embedding.1} parent=1 // pred_fallthru
      _
    // Predicated region
    $region10: #{patch_embedding.1} parent=1 // pred_check
      _
    $region11: #{patch_embedding.1} parent=1 // pred_check_branch
      %19 = sbr.rel (0) target = $region13
    $region12: #{patch_embedding.1} parent=1 // pred_region
      _
    $region13: #{patch_embedding.1} parent=1 // pred_fallthru
      _
    // Predicated region
    $region14: #{patch_embedding.1} parent=1 // pred_check
      _
    $region15: #{patch_embedding.1} parent=1 // pred_check_branch
      %21 = sbr.rel (0) target = $region17
    $region16: #{patch_embedding.1} parent=1 // pred_region
      _
    $region17: #{patch_embedding.1} parent=1 // pred_fallthru
      _
    // Predicated region
    $region18: #{patch_embedding.1} parent=1 // pred_check
      _
    $region19: #{patch_embedding.1} parent=1 // pred_check_branch
      %23 = sbr.rel (0) target = $region21
    $region20: #{patch_embedding.1} parent=1 // pred_region
      _
    $region21: #{patch_embedding.1} parent=1 // pred_fallthru
      _
    // Predicated region
    $region22: #{patch_embedding.1} parent=1 // pred_check
      _
    $region23: #{patch_embedding.1} parent=1 // pred_check_branch
      %25 = sbr.rel (0) target = $region25
    $region24: #{patch_embedding.1} parent=1 // pred_region
      _
    $region25: #{patch_embedding.1} parent=1 // pred_fallthru
      _
    // Predicated region
    $region26: #{patch_embedding.1} parent=1 // pred_check
      _
    $region27: #{patch_embedding.1} parent=1 // pred_check_branch
      %27 = sbr.rel (0) target = $region29
    $region28: #{patch_embedding.1} parent=1 // pred_region
      _
    $region29: #{patch_embedding.1} parent=1 // pred_fallthru
      _
    // Predicated region
    $region30: #{patch_embedding.1} parent=1 // pred_check
      _
    $region31: #{patch_embedding.1} parent=1 // pred_check_branch
      %29 = sbr.rel (0) target = $region33
    $region32: #{patch_embedding.1} parent=1 // pred_region
      _
    $region33: #{patch_embedding.1} parent=1 // pred_fallthru
      _
    %v30 = vld [vmem:[%s0] sm:$0xff]
    %v31 = vld [vmem:[%s0 + $0x8] sm:$0xff]
    %v32 = vld [vmem:[%s0 + $0x10] sm:$0xff]
    %v33 = vld [vmem:[%s0 + $0x18] sm:$0xff]
    %v34 = vld [vmem:[%s0 + $0x20] sm:$0xff]
    %v35 = vld [vmem:[%s0 + $0x28] sm:$0xff]
    %v36 = vld [vmem:[%s0 + $0x30] sm:$0xff]
    %v37 = vld [vmem:[%s0 + $0x38] sm:$0xff]
    %v38 = vld [vmem:[%s0 + $0x40] sm:$0xff]
    %v39 = vld [vmem:[%s0 + $0x48] sm:$0xff]
    %v40 = vld [vmem:[%s0 + $0x50] sm:$0xff]
    %v41 = vld [vmem:[%s0 + $0x58] sm:$0xff]
    %v42 = vld [vmem:[%s0 + $0x60] sm:$0xff]
    %v43 = vld [vmem:[%s0 + $0x68] sm:$0xff]
    %v44 = vld [vmem:[%s0 + $0x70] sm:$0xff]
    %v45 = vld [vmem:[%s0 + $0x78] sm:$0xff]
    %v46 = vld [vmem:[%s0 + $0x80] sm:$0xff]
    %v47 = vld [vmem:[%s0 + $0x88] sm:$0xff]
    %v48 = vld [vmem:[%s0 + $0x90] sm:$0xff]
    %v49 = vld [vmem:[%s0 + $0x98] sm:$0xff]
    %v50 = vld [vmem:[%s0 + $0xa0] sm:$0xff]
    %v51 = vld [vmem:[%s0 + $0xa8] sm:$0xff]
    %v52 = vld [vmem:[%s0 + $0xb0] sm:$0xff]
    %v53 = vld [vmem:[%s0 + $0xb8] sm:$0xff]
    %v54 = vld [vmem:[%s0 + $0xc0] sm:$0xff]
    %v55 = vld [vmem:[%s0 + $0xc8] sm:$0xff]
    %v56 = vld [vmem:[%s0 + $0xd0] sm:$0xff]
    %v57 = vld [vmem:[%s0 + $0xd8] sm:$0xff]
    %v58 = vld [vmem:[%s0 + $0xe0] sm:$0xff]
    %v59 = vld [vmem:[%s0 + $0xe8] sm:$0xff]
    %v60 = vld [vmem:[%s0 + $0xf0] sm:$0xff]
    %v61 = vld [vmem:[%s0 + $0xf8] sm:$0xff]
    %v62 = vld [vmem:[%s0 + $0x100] sm:$0xff]
    %v63 = vld [vmem:[%s0 + $0x108] sm:$0xff]
    %v64 = vld [vmem:[%s0 + $0x110] sm:$0xff]
    %v65 = vld [vmem:[%s0 + $0x118] sm:$0xff]
    %v66 = vld [vmem:[%s0 + $0x120] sm:$0xff]
    %v67 = vld [vmem:[%s0 + $0x128] sm:$0xff]
    %v68 = vld [vmem:[%s0 + $0x130] sm:$0xff]
    %v69 = vld [vmem:[%s0 + $0x138] sm:$0xff]
    %v70 = vld [vmem:[%s0 + $0x140] sm:$0xff]
    %v71 = vld [vmem:[%s0 + $0x148] sm:$0xff]
    %v72 = vld [vmem:[%s0 + $0x150] sm:$0xff]
    %v73 = vld [vmem:[%s0 + $0x158] sm:$0xff]
    %v74 = vld [vmem:[%s0 + $0x160] sm:$0xff]
    %v75 = vld [vmem:[%s0 + $0x168] sm:$0xff]
    %v76 = vld [vmem:[%s0 + $0x170] sm:$0xff]
    %v77 = vld [vmem:[%s0 + $0x178] sm:$0xff]
    %v78 = vld [vmem:[%s0 + $0x180] sm:$0xff]
    %v79 = vld [vmem:[%s0 + $0x188] sm:$0xff]
    %v80 = vld [vmem:[%s0 + $0x190] sm:$0xff]
    %v81 = vld [vmem:[%s0 + $0x198] sm:$0xff]
    %v82 = vld [vmem:[%s0 + $0x1a0] sm:$0xff]
    %v83 = vld [vmem:[%s0 + $0x1a8] sm:$0xff]
    %v84 = vld [vmem:[%s0 + $0x1b0] sm:$0xff]
    %v85 = vld [vmem:[%s0 + $0x1b8] sm:$0xff]
    %v86 = vld [vmem:[%s0 + $0x1c0] sm:$0xff]
    %v87 = vld [vmem:[%s0 + $0x1c8] sm:$0xff]
    %v88 = vld [vmem:[%s0 + $0x1d0] sm:$0xff]
    %v89 = vld [vmem:[%s0 + $0x1d8] sm:$0xff]
    %v90 = vld [vmem:[%s0 + $0x1e0] sm:$0xff]
    %v91 = vld [vmem:[%s0 + $0x1e8] sm:$0xff]
    %v92 = vld [vmem:[%s0 + $0x1f0] sm:$0xff]
    %v93 = vld [vmem:[%s0 + $0x1f8] sm:$0xff]
    %v94 = vld [vmem:[%s1] sm:$0xff]
    %v95 = vld [vmem:[%s1 + $0x8] sm:$0xff]
    %v96 = vld [vmem:[%s1 + $0x10] sm:$0xff]
    %v97 = vld [vmem:[%s1 + $0x18] sm:$0xff]
    %v98 = vld [vmem:[%s1 + $0x20] sm:$0xff]
    %v99 = vld [vmem:[%s1 + $0x28] sm:$0xff]
    %v100 = vld [vmem:[%s1 + $0x30] sm:$0xff]
    %v101 = vld [vmem:[%s1 + $0x38] sm:$0xff]
    %v102 = vld [vmem:[%s1 + $0x40] sm:$0xff]
    %v103 = vld [vmem:[%s1 + $0x48] sm:$0xff]
    %v104 = vld [vmem:[%s1 + $0x50] sm:$0xff]
    %v105 = vld [vmem:[%s1 + $0x58] sm:$0xff]
    %v106 = vld [vmem:[%s1 + $0x60] sm:$0xff]
    %v107 = vld [vmem:[%s1 + $0x68] sm:$0xff]
    %v108 = vld [vmem:[%s1 + $0x70] sm:$0xff]
    %v109 = vld [vmem:[%s1 + $0x78] sm:$0xff]
    %v110 = vld [vmem:[%s2] sm:$0x1]
    %v112 = vperm.slane %v110, 0
    %114 = vmatpush.msra.mxu0 %v109
    %115 = vmatpush.msra.mxu0 %v108
    %116 = vmatpush.msra.mxu0 %v107
    %117 = vmatpush.msra.mxu0 %v106
    %118 = vmatpush.msra.mxu0 %v105
    %119 = vmatpush.msra.mxu0 %v104
    %120 = vmatpush.msra.mxu0 %v103
    %121 = vmatpush.msra.mxu0 %v102
    %122 = vmatpush.msra.mxu0 %v101
    %123 = vmatpush.msra.mxu0 %v100
    %124 = vmatpush.msra.mxu0 %v99
    %125 = vmatpush.msra.mxu0 %v98
    %126 = vmatpush.msra.mxu0 %v97
    %127 = vmatpush.msra.mxu0 %v96
    %128 = vmatpush.msra.mxu0 %v95
    %129 = vmatpush.msra.mxu0 %v94
    %130 = vmatmul.f32.gmra.mxu0 %v30
    %v131 = vpop.f32.mrf.mxu0
    %v132 = vadd.f32 %v112, %v131
    %133 = vmatmul.f32.gmra.mxu0 %v31
    %v134 = vpop.f32.mrf.mxu0
    %v135 = vadd.f32 %v112, %v134
    %136 = vmatmul.f32.gmra.mxu0 %v32
    %v137 = vpop.f32.mrf.mxu0
    %v138 = vadd.f32 %v112, %v137
    %139 = vmatmul.f32.gmra.mxu0 %v33
    %v140 = vpop.f32.mrf.mxu0
    %v141 = vadd.f32 %v112, %v140
    %142 = vmatmul.f32.gmra.mxu0 %v34
    %v143 = vpop.f32.mrf.mxu0
    %v144 = vadd.f32 %v112, %v143
    %145 = vmatmul.f32.gmra.mxu0 %v35
    %v146 = vpop.f32.mrf.mxu0
    %v147 = vadd.f32 %v112, %v146
    %148 = vmatmul.f32.gmra.mxu0 %v36
    %v149 = vpop.f32.mrf.mxu0
    %v150 = vadd.f32 %v112, %v149
    %151 = vmatmul.f32.gmra.mxu0 %v37
    %v152 = vpop.f32.mrf.mxu0
    %v153 = vadd.f32 %v112, %v152
    %154 = vmatmul.f32.gmra.mxu0 %v38
    %v155 = vpop.f32.mrf.mxu0
    %v156 = vadd.f32 %v112, %v155
    %157 = vmatmul.f32.gmra.mxu0 %v39
    %v158 = vpop.f32.mrf.mxu0
    %v159 = vadd.f32 %v112, %v158
    %160 = vmatmul.f32.gmra.mxu0 %v40
    %v161 = vpop.f32.mrf.mxu0
    %v162 = vadd.f32 %v112, %v161
    %163 = vmatmul.f32.gmra.mxu0 %v41
    %v164 = vpop.f32.mrf.mxu0
    %v165 = vadd.f32 %v112, %v164
    %166 = vmatmul.f32.gmra.mxu0 %v42
    %v167 = vpop.f32.mrf.mxu0
    %v168 = vadd.f32 %v112, %v167
    %169 = vmatmul.f32.gmra.mxu0 %v43
    %v170 = vpop.f32.mrf.mxu0
    %v171 = vadd.f32 %v112, %v170
    %172 = vmatmul.f32.gmra.mxu0 %v44
    %v173 = vpop.f32.mrf.mxu0
    %v174 = vadd.f32 %v112, %v173
    %175 = vmatmul.f32.gmra.mxu0 %v45
    %v176 = vpop.f32.mrf.mxu0
    %v177 = vadd.f32 %v112, %v176
    %178 = vmatmul.f32.gmra.mxu0 %v46
    %v179 = vpop.f32.mrf.mxu0
    %v180 = vadd.f32 %v112, %v179
    %181 = vmatmul.f32.gmra.mxu0 %v47
    %v182 = vpop.f32.mrf.mxu0
    %v183 = vadd.f32 %v112, %v182
    %184 = vmatmul.f32.gmra.mxu0 %v48
    %v185 = vpop.f32.mrf.mxu0
    %v186 = vadd.f32 %v112, %v185
    %187 = vmatmul.f32.gmra.mxu0 %v49
    %v188 = vpop.f32.mrf.mxu0
    %v189 = vadd.f32 %v112, %v188
    %190 = vmatmul.f32.gmra.mxu0 %v50
    %v191 = vpop.f32.mrf.mxu0
    %v192 = vadd.f32 %v112, %v191
    %193 = vmatmul.f32.gmra.mxu0 %v51
    %v194 = vpop.f32.mrf.mxu0
    %v195 = vadd.f32 %v112, %v194
    %196 = vmatmul.f32.gmra.mxu0 %v52
    %v197 = vpop.f32.mrf.mxu0
    %v198 = vadd.f32 %v112, %v197
    %199 = vmatmul.f32.gmra.mxu0 %v53
    %v200 = vpop.f32.mrf.mxu0
    %v201 = vadd.f32 %v112, %v200
    %202 = vmatmul.f32.gmra.mxu0 %v54
    %v203 = vpop.f32.mrf.mxu0
    %v204 = vadd.f32 %v112, %v203
    %205 = vmatmul.f32.gmra.mxu0 %v55
    %v206 = vpop.f32.mrf.mxu0
    %v207 = vadd.f32 %v112, %v206
    %208 = vmatmul.f32.gmra.mxu0 %v56
    %v209 = vpop.f32.mrf.mxu0
    %v210 = vadd.f32 %v112, %v209
    %211 = vmatmul.f32.gmra.mxu0 %v57
    %v212 = vpop.f32.mrf.mxu0
    %v213 = vadd.f32 %v112, %v212
    %214 = vmatmul.f32.gmra.mxu0 %v58
    %v215 = vpop.f32.mrf.mxu0
    %v216 = vadd.f32 %v112, %v215
    %217 = vmatmul.f32.gmra.mxu0 %v59
    %v218 = vpop.f32.mrf.mxu0
    %v219 = vadd.f32 %v112, %v218
    %220 = vmatmul.f32.gmra.mxu0 %v60
    %v221 = vpop.f32.mrf.mxu0
    %v222 = vadd.f32 %v112, %v221
    %223 = vmatmul.f32.gmra.mxu0 %v61
    %v224 = vpop.f32.mrf.mxu0
    %v225 = vadd.f32 %v112, %v224
    %226 = vmatmul.f32.gmra.mxu0 %v62
    %v227 = vpop.f32.mrf.mxu0
    %v228 = vadd.f32 %v112, %v227
    %229 = vmatmul.f32.gmra.mxu0 %v63
    %v230 = vpop.f32.mrf.mxu0
    %v231 = vadd.f32 %v112, %v230
    %232 = vmatmul.f32.gmra.mxu0 %v64
    %v233 = vpop.f32.mrf.mxu0
    %v234 = vadd.f32 %v112, %v233
    %235 = vmatmul.f32.gmra.mxu0 %v65
    %v236 = vpop.f32.mrf.mxu0
    %v237 = vadd.f32 %v112, %v236
    %238 = vmatmul.f32.gmra.mxu0 %v66
    %v239 = vpop.f32.mrf.mxu0
    %v240 = vadd.f32 %v112, %v239
    %241 = vmatmul.f32.gmra.mxu0 %v67
    %v242 = vpop.f32.mrf.mxu0
    %v243 = vadd.f32 %v112, %v242
    %244 = vmatmul.f32.gmra.mxu0 %v68
    %v245 = vpop.f32.mrf.mxu0
    %v246 = vadd.f32 %v112, %v245
    %247 = vmatmul.f32.gmra.mxu0 %v69
    %v248 = vpop.f32.mrf.mxu0
    %v249 = vadd.f32 %v112, %v248
    %250 = vmatmul.f32.gmra.mxu0 %v70
    %v251 = vpop.f32.mrf.mxu0
    %v252 = vadd.f32 %v112, %v251
    %253 = vmatmul.f32.gmra.mxu0 %v71
    %v254 = vpop.f32.mrf.mxu0
    %v255 = vadd.f32 %v112, %v254
    %256 = vmatmul.f32.gmra.mxu0 %v72
    %v257 = vpop.f32.mrf.mxu0
    %v258 = vadd.f32 %v112, %v257
    %259 = vmatmul.f32.gmra.mxu0 %v73
    %v260 = vpop.f32.mrf.mxu0
    %v261 = vadd.f32 %v112, %v260
    %262 = vmatmul.f32.gmra.mxu0 %v74
    %v263 = vpop.f32.mrf.mxu0
    %v264 = vadd.f32 %v112, %v263
    %265 = vmatmul.f32.gmra.mxu0 %v75
    %v266 = vpop.f32.mrf.mxu0
    %v267 = vadd.f32 %v112, %v266
    %268 = vmatmul.f32.gmra.mxu0 %v76
    %v269 = vpop.f32.mrf.mxu0
    %v270 = vadd.f32 %v112, %v269
    %271 = vmatmul.f32.gmra.mxu0 %v77
    %v272 = vpop.f32.mrf.mxu0
    %v273 = vadd.f32 %v112, %v272
    %274 = vmatmul.f32.gmra.mxu0 %v78
    %v275 = vpop.f32.mrf.mxu0
    %v276 = vadd.f32 %v112, %v275
    %277 = vmatmul.f32.gmra.mxu0 %v79
    %v278 = vpop.f32.mrf.mxu0
    %v279 = vadd.f32 %v112, %v278
    %280 = vmatmul.f32.gmra.mxu0 %v80
    %v281 = vpop.f32.mrf.mxu0
    %v282 = vadd.f32 %v112, %v281
    %283 = vmatmul.f32.gmra.mxu0 %v81
    %v284 = vpop.f32.mrf.mxu0
    %v285 = vadd.f32 %v112, %v284
    %286 = vmatmul.f32.gmra.mxu0 %v82
    %v287 = vpop.f32.mrf.mxu0
    %v288 = vadd.f32 %v112, %v287
    %289 = vmatmul.f32.gmra.mxu0 %v83
    %v290 = vpop.f32.mrf.mxu0
    %v291 = vadd.f32 %v112, %v290
    %292 = vmatmul.f32.gmra.mxu0 %v84
    %v293 = vpop.f32.mrf.mxu0
    %v294 = vadd.f32 %v112, %v293
    %295 = vmatmul.f32.gmra.mxu0 %v85
    %v296 = vpop.f32.mrf.mxu0
    %v297 = vadd.f32 %v112, %v296
    %298 = vmatmul.f32.gmra.mxu0 %v86
    %v299 = vpop.f32.mrf.mxu0
    %v300 = vadd.f32 %v112, %v299
    %301 = vmatmul.f32.gmra.mxu0 %v87
    %v302 = vpop.f32.mrf.mxu0
    %v303 = vadd.f32 %v112, %v302
    %304 = vmatmul.f32.gmra.mxu0 %v88
    %v305 = vpop.f32.mrf.mxu0
    %v306 = vadd.f32 %v112, %v305
    %307 = vmatmul.f32.gmra.mxu0 %v89
    %v308 = vpop.f32.mrf.mxu0
    %v309 = vadd.f32 %v112, %v308
    %310 = vmatmul.f32.gmra.mxu0 %v90
    %v311 = vpop.f32.mrf.mxu0
    %v312 = vadd.f32 %v112, %v311
    %313 = vmatmul.f32.gmra.mxu0 %v91
    %v314 = vpop.f32.mrf.mxu0
    %v315 = vadd.f32 %v112, %v314
    %316 = vmatmul.f32.gmra.mxu0 %v92
    %v317 = vpop.f32.mrf.mxu0
    %v318 = vadd.f32 %v112, %v317
    %319 = vmatmul.f32.gmra.mxu0 %v93
    %v320 = vpop.f32.mrf.mxu0
    %v321 = vadd.f32 %v112, %v320
    %322 = vdwg.mxu0
    %v323 = vmax.f32 %v132, 0.0
    %v324 = vmax.f32 %v135, 0.0
    %v325 = vmax.f32 %v138, 0.0
    %v326 = vmax.f32 %v141, 0.0
    %v327 = vmax.f32 %v144, 0.0
    %v328 = vmax.f32 %v147, 0.0
    %v329 = vmax.f32 %v150, 0.0
    %v330 = vmax.f32 %v153, 0.0
    %v331 = vmax.f32 %v156, 0.0
    %v332 = vmax.f32 %v159, 0.0
    %v333 = vmax.f32 %v162, 0.0
    %v334 = vmax.f32 %v165, 0.0
    %v335 = vmax.f32 %v168, 0.0
    %v336 = vmax.f32 %v171, 0.0
    %v337 = vmax.f32 %v174, 0.0
    %v338 = vmax.f32 %v177, 0.0
    %v339 = vmax.f32 %v180, 0.0
    %v340 = vmax.f32 %v183, 0.0
    %v341 = vmax.f32 %v186, 0.0
    %v342 = vmax.f32 %v189, 0.0
    %v343 = vmax.f32 %v192, 0.0
    %v344 = vmax.f32 %v195, 0.0
    %v345 = vmax.f32 %v198, 0.0
    %v346 = vmax.f32 %v201, 0.0
    %v347 = vmax.f32 %v204, 0.0
    %v348 = vmax.f32 %v207, 0.0
    %v349 = vmax.f32 %v210, 0.0
    %v350 = vmax.f32 %v213, 0.0
    %v351 = vmax.f32 %v216, 0.0
    %v352 = vmax.f32 %v219, 0.0
    %v353 = vmax.f32 %v222, 0.0
    %v354 = vmax.f32 %v225, 0.0
    %v355 = vmax.f32 %v228, 0.0
    %v356 = vmax.f32 %v231, 0.0
    %v357 = vmax.f32 %v234, 0.0
    %v358 = vmax.f32 %v237, 0.0
    %v359 = vmax.f32 %v240, 0.0
    %v360 = vmax.f32 %v243, 0.0
    %v361 = vmax.f32 %v246, 0.0
    %v362 = vmax.f32 %v249, 0.0
    %v363 = vmax.f32 %v252, 0.0
    %v364 = vmax.f32 %v255, 0.0
    %v365 = vmax.f32 %v258, 0.0
    %v366 = vmax.f32 %v261, 0.0
    %v367 = vmax.f32 %v264, 0.0
    %v368 = vmax.f32 %v267, 0.0
    %v369 = vmax.f32 %v270, 0.0
    %v370 = vmax.f32 %v273, 0.0
    %v371 = vmax.f32 %v276, 0.0
    %v372 = vmax.f32 %v279, 0.0
    %v373 = vmax.f32 %v282, 0.0
    %v374 = vmax.f32 %v285, 0.0
    %v375 = vmax.f32 %v288, 0.0
    %v376 = vmax.f32 %v291, 0.0
    %v377 = vmax.f32 %v294, 0.0
    %v378 = vmax.f32 %v297, 0.0
    %v379 = vmax.f32 %v300, 0.0
    %v380 = vmax.f32 %v303, 0.0
    %v381 = vmax.f32 %v306, 0.0
    %v382 = vmax.f32 %v309, 0.0
    %v383 = vmax.f32 %v312, 0.0
    %v384 = vmax.f32 %v315, 0.0
    %v385 = vmax.f32 %v318, 0.0
    %v386 = vmax.f32 %v321, 0.0
    %v387 = vld [vmem:[%s3] sm:$0xff]
    %v388 = vld [vmem:[%s3 + $0x8] sm:$0xff]
    %v389 = vld [vmem:[%s3 + $0x10] sm:$0xff]
    %v390 = vld [vmem:[%s3 + $0x18] sm:$0xff]
    %v391 = vld [vmem:[%s3 + $0x20] sm:$0xff]
    %v392 = vld [vmem:[%s3 + $0x28] sm:$0xff]
    %v393 = vld [vmem:[%s3 + $0x30] sm:$0xff]
    %v394 = vld [vmem:[%s3 + $0x38] sm:$0xff]
    %v395 = vld [vmem:[%s3 + $0x40] sm:$0xff]
    %v396 = vld [vmem:[%s3 + $0x48] sm:$0xff]
    %v397 = vld [vmem:[%s3 + $0x50] sm:$0xff]
    %v398 = vld [vmem:[%s3 + $0x58] sm:$0xff]
    %v399 = vld [vmem:[%s3 + $0x60] sm:$0xff]
    %v400 = vld [vmem:[%s3 + $0x68] sm:$0xff]
    %v401 = vld [vmem:[%s3 + $0x70] sm:$0xff]
    %v402 = vld [vmem:[%s3 + $0x78] sm:$0xff]
    %v403 = vld [vmem:[%s3 + $0x80] sm:$0xff]
    %v404 = vld [vmem:[%s3 + $0x88] sm:$0xff]
    %v405 = vld [vmem:[%s3 + $0x90] sm:$0xff]
    %v406 = vld [vmem:[%s3 + $0x98] sm:$0xff]
    %v407 = vld [vmem:[%s3 + $0xa0] sm:$0xff]
    %v408 = vld [vmem:[%s3 + $0xa8] sm:$0xff]
    %v409 = vld [vmem:[%s3 + $0xb0] sm:$0xff]
    %v410 = vld [vmem:[%s3 + $0xb8] sm:$0xff]
    %v411 = vld [vmem:[%s3 + $0xc0] sm:$0xff]
    %v412 = vld [vmem:[%s3 + $0xc8] sm:$0xff]
    %v413 = vld [vmem:[%s3 + $0xd0] sm:$0xff]
    %v414 = vld [vmem:[%s3 + $0xd8] sm:$0xff]
    %v415 = vld [vmem:[%s3 + $0xe0] sm:$0xff]
    %v416 = vld [vmem:[%s3 + $0xe8] sm:$0xff]
    %v417 = vld [vmem:[%s3 + $0xf0] sm:$0xff]
    %v418 = vld [vmem:[%s3 + $0xf8] sm:$0xff]
    %v419 = vld [vmem:[%s3 + $0x100] sm:$0xff]
    %v420 = vld [vmem:[%s3 + $0x108] sm:$0xff]
    %v421 = vld [vmem:[%s3 + $0x110] sm:$0xff]
    %v422 = vld [vmem:[%s3 + $0x118] sm:$0xff]
    %v423 = vld [vmem:[%s3 + $0x120] sm:$0xff]
    %v424 = vld [vmem:[%s3 + $0x128] sm:$0xff]
    %v425 = vld [vmem:[%s3 + $0x130] sm:$0xff]
    %v426 = vld [vmem:[%s3 + $0x138] sm:$0xff]
    %v427 = vld [vmem:[%s3 + $0x140] sm:$0xff]
    %v428 = vld [vmem:[%s3 + $0x148] sm:$0xff]
    %v429 = vld [vmem:[%s3 + $0x150] sm:$0xff]
    %v430 = vld [vmem:[%s3 + $0x158] sm:$0xff]
    %v431 = vld [vmem:[%s3 + $0x160] sm:$0xff]
    %v432 = vld [vmem:[%s3 + $0x168] sm:$0xff]
    %v433 = vld [vmem:[%s3 + $0x170] sm:$0xff]
    %v434 = vld [vmem:[%s3 + $0x178] sm:$0xff]
    %v435 = vld [vmem:[%s3 + $0x180] sm:$0xff]
    %v436 = vld [vmem:[%s3 + $0x188] sm:$0xff]
    %v437 = vld [vmem:[%s3 + $0x190] sm:$0xff]
    %v438 = vld [vmem:[%s3 + $0x198] sm:$0xff]
    %v439 = vld [vmem:[%s3 + $0x1a0] sm:$0xff]
    %v440 = vld [vmem:[%s3 + $0x1a8] sm:$0xff]
    %v441 = vld [vmem:[%s3 + $0x1b0] sm:$0xff]
    %v442 = vld [vmem:[%s3 + $0x1b8] sm:$0xff]
    %v443 = vld [vmem:[%s3 + $0x1c0] sm:$0xff]
    %v444 = vld [vmem:[%s3 + $0x1c8] sm:$0xff]
    %v445 = vld [vmem:[%s3 + $0x1d0] sm:$0xff]
    %v446 = vld [vmem:[%s3 + $0x1d8] sm:$0xff]
    %v447 = vld [vmem:[%s3 + $0x1e0] sm:$0xff]
    %v448 = vld [vmem:[%s3 + $0x1e8] sm:$0xff]
    %v449 = vld [vmem:[%s3 + $0x1f0] sm:$0xff]
    %v450 = vld [vmem:[%s3 + $0x1f8] sm:$0xff]
    %451 = vmatpush.msra.mxu0 %v338
    %452 = vmatpush.msra.mxu0 %v337
    %453 = vmatpush.msra.mxu0 %v336
    %454 = vmatpush.msra.mxu0 %v335
    %455 = vmatpush.msra.mxu0 %v334
    %456 = vmatpush.msra.mxu0 %v333
    %457 = vmatpush.msra.mxu0 %v332
    %458 = vmatpush.msra.mxu0 %v331
    %459 = vmatpush.msra.mxu0 %v330
    %460 = vmatpush.msra.mxu0 %v329
    %461 = vmatpush.msra.mxu0 %v328
    %462 = vmatpush.msra.mxu0 %v327
    %463 = vmatpush.msra.mxu0 %v326
    %464 = vmatpush.msra.mxu0 %v325
    %465 = vmatpush.msra.mxu0 %v324
    %466 = vmatpush.msra.mxu0 %v323
    %467 = vmatmul.f32.gmra.mxu0 %v387
    %v468 = vpop.f32.mrf.mxu0
    %v469 = vadd.f32 0.0, %v468
    %470 = vmatmul.f32.gmra.mxu0 %v391
    %v471 = vpop.f32.mrf.mxu0
    %v472 = vadd.f32 0.0, %v471
    %473 = vmatmul.f32.gmra.mxu0 %v395
    %v474 = vpop.f32.mrf.mxu0
    %v475 = vadd.f32 0.0, %v474
    %476 = vmatmul.f32.gmra.mxu0 %v399
    %v477 = vpop.f32.mrf.mxu0
    %v478 = vadd.f32 0.0, %v477
    %479 = vmatmul.f32.gmra.mxu0 %v403
    %v480 = vpop.f32.mrf.mxu0
    %v481 = vadd.f32 0.0, %v480
    %482 = vmatmul.f32.gmra.mxu0 %v407
    %v483 = vpop.f32.mrf.mxu0
    %v484 = vadd.f32 0.0, %v483
    %485 = vmatmul.f32.gmra.mxu0 %v411
    %v486 = vpop.f32.mrf.mxu0
    %v487 = vadd.f32 0.0, %v486
    %488 = vmatmul.f32.gmra.mxu0 %v415
    %v489 = vpop.f32.mrf.mxu0
    %v490 = vadd.f32 0.0, %v489
    %491 = vmatmul.f32.gmra.mxu0 %v419
    %v492 = vpop.f32.mrf.mxu0
    %v493 = vadd.f32 0.0, %v492
    %494 = vmatmul.f32.gmra.mxu0 %v423
    %v495 = vpop.f32.mrf.mxu0
    %v496 = vadd.f32 0.0, %v495
    %497 = vmatmul.f32.gmra.mxu0 %v427
    %v498 = vpop.f32.mrf.mxu0
    %v499 = vadd.f32 0.0, %v498
    %500 = vmatmul.f32.gmra.mxu0 %v431
    %v501 = vpop.f32.mrf.mxu0
    %v502 = vadd.f32 0.0, %v501
    %503 = vmatmul.f32.gmra.mxu0 %v435
    %v504 = vpop.f32.mrf.mxu0
    %v505 = vadd.f32 0.0, %v504
    %506 = vmatmul.f32.gmra.mxu0 %v439
    %v507 = vpop.f32.mrf.mxu0
    %v508 = vadd.f32 0.0, %v507
    %509 = vmatmul.f32.gmra.mxu0 %v443
    %v510 = vpop.f32.mrf.mxu0
    %v511 = vadd.f32 0.0, %v510
    %512 = vmatmul.f32.gmra.mxu0 %v447
    %v513 = vpop.f32.mrf.mxu0
    %v514 = vadd.f32 0.0, %v513
    %515 = vdwg.mxu0
    %516 = vmatpush.msra.mxu0 %v354
    %517 = vmatpush.msra.mxu0 %v353
    %518 = vmatpush.msra.mxu0 %v352
    %519 = vmatpush.msra.mxu0 %v351
    %520 = vmatpush.msra.mxu0 %v350
    %521 = vmatpush.msra.mxu0 %v349
    %522 = vmatpush.msra.mxu0 %v348
    %523 = vmatpush.msra.mxu0 %v347
    %524 = vmatpush.msra.mxu0 %v346
    %525 = vmatpush.msra.mxu0 %v345
    %526 = vmatpush.msra.mxu0 %v344
    %527 = vmatpush.msra.mxu0 %v343
    %528 = vmatpush.msra.mxu0 %v342
    %529 = vmatpush.msra.mxu0 %v341
    %530 = vmatpush.msra.mxu0 %v340
    %531 = vmatpush.msra.mxu0 %v339
    %532 = vmatmul.f32.gmra.mxu0 %v388
    %v533 = vpop.f32.mrf.mxu0
    %v534 = vadd.f32 %v469, %v533
    %535 = vmatmul.f32.gmra.mxu0 %v392
    %v536 = vpop.f32.mrf.mxu0
    %v537 = vadd.f32 %v472, %v536
    %538 = vmatmul.f32.gmra.mxu0 %v396
    %v539 = vpop.f32.mrf.mxu0
    %v540 = vadd.f32 %v475, %v539
    %541 = vmatmul.f32.gmra.mxu0 %v400
    %v542 = vpop.f32.mrf.mxu0
    %v543 = vadd.f32 %v478, %v542
    %544 = vmatmul.f32.gmra.mxu0 %v404
    %v545 = vpop.f32.mrf.mxu0
    %v546 = vadd.f32 %v481, %v545
    %547 = vmatmul.f32.gmra.mxu0 %v408
    %v548 = vpop.f32.mrf.mxu0
    %v549 = vadd.f32 %v484, %v548
    %550 = vmatmul.f32.gmra.mxu0 %v412
    %v551 = vpop.f32.mrf.mxu0
    %v552 = vadd.f32 %v487, %v551
    %553 = vmatmul.f32.gmra.mxu0 %v416
    %v554 = vpop.f32.mrf.mxu0
    %v555 = vadd.f32 %v490, %v554
    %556 = vmatmul.f32.gmra.mxu0 %v420
    %v557 = vpop.f32.mrf.mxu0
    %v558 = vadd.f32 %v493, %v557
    %559 = vmatmul.f32.gmra.mxu0 %v424
    %v560 = vpop.f32.mrf.mxu0
    %v561 = vadd.f32 %v496, %v560
    %562 = vmatmul.f32.gmra.mxu0 %v428
    %v563 = vpop.f32.mrf.mxu0
    %v564 = vadd.f32 %v499, %v563
    %565 = vmatmul.f32.gmra.mxu0 %v432
    %v566 = vpop.f32.mrf.mxu0
    %v567 = vadd.f32 %v502, %v566
    %568 = vmatmul.f32.gmra.mxu0 %v436
    %v569 = vpop.f32.mrf.mxu0
    %v570 = vadd.f32 %v505, %v569
    %571 = vmatmul.f32.gmra.mxu0 %v440
    %v572 = vpop.f32.mrf.mxu0
    %v573 = vadd.f32 %v508, %v572
    %574 = vmatmul.f32.gmra.mxu0 %v444
    %v575 = vpop.f32.mrf.mxu0
    %v576 = vadd.f32 %v511, %v575
    %577 = vmatmul.f32.gmra.mxu0 %v448
    %v578 = vpop.f32.mrf.mxu0
    %v579 = vadd.f32 %v514, %v578
    %580 = vdwg.mxu0
    %581 = vmatpush.msra.mxu0 %v370
    %582 = vmatpush.msra.mxu0 %v369
    %583 = vmatpush.msra.mxu0 %v368
    %584 = vmatpush.msra.mxu0 %v367
    %585 = vmatpush.msra.mxu0 %v366
    %586 = vmatpush.msra.mxu0 %v365
    %587 = vmatpush.msra.mxu0 %v364
    %588 = vmatpush.msra.mxu0 %v363
    %589 = vmatpush.msra.mxu0 %v362
    %590 = vmatpush.msra.mxu0 %v361
    %591 = vmatpush.msra.mxu0 %v360
    %592 = vmatpush.msra.mxu0 %v359
    %593 = vmatpush.msra.mxu0 %v358
    %594 = vmatpush.msra.mxu0 %v357
    %595 = vmatpush.msra.mxu0 %v356
    %596 = vmatpush.msra.mxu0 %v355
    %597 = vmatmul.f32.gmra.mxu0 %v389
    %v598 = vpop.f32.mrf.mxu0
    %v599 = vadd.f32 %v534, %v598
    %600 = vmatmul.f32.gmra.mxu0 %v393
    %v601 = vpop.f32.mrf.mxu0
    %v602 = vadd.f32 %v537, %v601
    %603 = vmatmul.f32.gmra.mxu0 %v397
    %v604 = vpop.f32.mrf.mxu0
    %v605 = vadd.f32 %v540, %v604
    %606 = vmatmul.f32.gmra.mxu0 %v401
    %v607 = vpop.f32.mrf.mxu0
    %v608 = vadd.f32 %v543, %v607
    %609 = vmatmul.f32.gmra.mxu0 %v405
    %v610 = vpop.f32.mrf.mxu0
    %v611 = vadd.f32 %v546, %v610
    %612 = vmatmul.f32.gmra.mxu0 %v409
    %v613 = vpop.f32.mrf.mxu0
    %v614 = vadd.f32 %v549, %v613
    %615 = vmatmul.f32.gmra.mxu0 %v413
    %v616 = vpop.f32.mrf.mxu0
    %v617 = vadd.f32 %v552, %v616
    %618 = vmatmul.f32.gmra.mxu0 %v417
    %v619 = vpop.f32.mrf.mxu0
    %v620 = vadd.f32 %v555, %v619
    %621 = vmatmul.f32.gmra.mxu0 %v421
    %v622 = vpop.f32.mrf.mxu0
    %v623 = vadd.f32 %v558, %v622
    %624 = vmatmul.f32.gmra.mxu0 %v425
    %v625 = vpop.f32.mrf.mxu0
    %v626 = vadd.f32 %v561, %v625
    %627 = vmatmul.f32.gmra.mxu0 %v429
    %v628 = vpop.f32.mrf.mxu0
    %v629 = vadd.f32 %v564, %v628
    %630 = vmatmul.f32.gmra.mxu0 %v433
    %v631 = vpop.f32.mrf.mxu0
    %v632 = vadd.f32 %v567, %v631
    %633 = vmatmul.f32.gmra.mxu0 %v437
    %v634 = vpop.f32.mrf.mxu0
    %v635 = vadd.f32 %v570, %v634
    %636 = vmatmul.f32.gmra.mxu0 %v441
    %v637 = vpop.f32.mrf.mxu0
    %v638 = vadd.f32 %v573, %v637
    %639 = vmatmul.f32.gmra.mxu0 %v445
    %v640 = vpop.f32.mrf.mxu0
    %v641 = vadd.f32 %v576, %v640
    %642 = vmatmul.f32.gmra.mxu0 %v449
    %v643 = vpop.f32.mrf.mxu0
    %v644 = vadd.f32 %v579, %v643
    %645 = vdwg.mxu0
    %646 = vmatpush.msra.mxu0 %v386
    %647 = vmatpush.msra.mxu0 %v385
    %648 = vmatpush.msra.mxu0 %v384
    %649 = vmatpush.msra.mxu0 %v383
    %650 = vmatpush.msra.mxu0 %v382
    %651 = vmatpush.msra.mxu0 %v381
    %652 = vmatpush.msra.mxu0 %v380
    %653 = vmatpush.msra.mxu0 %v379
    %654 = vmatpush.msra.mxu0 %v378
    %655 = vmatpush.msra.mxu0 %v377
    %656 = vmatpush.msra.mxu0 %v376
    %657 = vmatpush.msra.mxu0 %v375
    %658 = vmatpush.msra.mxu0 %v374
    %659 = vmatpush.msra.mxu0 %v373
    %660 = vmatpush.msra.mxu0 %v372
    %661 = vmatpush.msra.mxu0 %v371
    %662 = vmatmul.f32.gmra.mxu0 %v390
    %v663 = vpop.f32.mrf.mxu0
    %v664 = vadd.f32 %v599, %v663
    %665 = vmatmul.f32.gmra.mxu0 %v394
    %v666 = vpop.f32.mrf.mxu0
    %v667 = vadd.f32 %v602, %v666
    %668 = vmatmul.f32.gmra.mxu0 %v398
    %v669 = vpop.f32.mrf.mxu0
    %v670 = vadd.f32 %v605, %v669
    %671 = vmatmul.f32.gmra.mxu0 %v402
    %v672 = vpop.f32.mrf.mxu0
    %v673 = vadd.f32 %v608, %v672
    %674 = vmatmul.f32.gmra.mxu0 %v406
    %v675 = vpop.f32.mrf.mxu0
    %v676 = vadd.f32 %v611, %v675
    %677 = vmatmul.f32.gmra.mxu0 %v410
    %v678 = vpop.f32.mrf.mxu0
    %v679 = vadd.f32 %v614, %v678
    %680 = vmatmul.f32.gmra.mxu0 %v414
    %v681 = vpop.f32.mrf.mxu0
    %v682 = vadd.f32 %v617, %v681
    %683 = vmatmul.f32.gmra.mxu0 %v418
    %v684 = vpop.f32.mrf.mxu0
    %v685 = vadd.f32 %v620, %v684
    %686 = vmatmul.f32.gmra.mxu0 %v422
    %v687 = vpop.f32.mrf.mxu0
    %v688 = vadd.f32 %v623, %v687
    %689 = vmatmul.f32.gmra.mxu0 %v426
    %v690 = vpop.f32.mrf.mxu0
    %v691 = vadd.f32 %v626, %v690
    %692 = vmatmul.f32.gmra.mxu0 %v430
    %v693 = vpop.f32.mrf.mxu0
    %v694 = vadd.f32 %v629, %v693
    %695 = vmatmul.f32.gmra.mxu0 %v434
    %v696 = vpop.f32.mrf.mxu0
    %v697 = vadd.f32 %v632, %v696
    %698 = vmatmul.f32.gmra.mxu0 %v438
    %v699 = vpop.f32.mrf.mxu0
    %v700 = vadd.f32 %v635, %v699
    %701 = vmatmul.f32.gmra.mxu0 %v442
    %v702 = vpop.f32.mrf.mxu0
    %v703 = vadd.f32 %v638, %v702
    %704 = vmatmul.f32.gmra.mxu0 %v446
    %v705 = vpop.f32.mrf.mxu0
    %v706 = vadd.f32 %v641, %v705
    %707 = vmatmul.f32.gmra.mxu0 %v450
    %v708 = vpop.f32.mrf.mxu0
    %v709 = vadd.f32 %v644, %v708
    %710 = vdwg.mxu0
    %v711 = vld [vmem:[%s4] sm:$0xff]
    %v712 = vld [vmem:[%s4 + $0x8] sm:$0xff]
    %v713 = vld [vmem:[%s4 + $0x10] sm:$0xff]
    %v714 = vld [vmem:[%s4 + $0x18] sm:$0xff]
    %v715 = vld [vmem:[%s4 + $0x20] sm:$0xff]
    %v716 = vld [vmem:[%s4 + $0x28] sm:$0xff]
    %v717 = vld [vmem:[%s4 + $0x30] sm:$0xff]
    %v718 = vld [vmem:[%s4 + $0x38] sm:$0xff]
    %v719 = vld [vmem:[%s4 + $0x40] sm:$0xff]
    %v720 = vld [vmem:[%s4 + $0x48] sm:$0xff]
    %v721 = vld [vmem:[%s4 + $0x50] sm:$0xff]
    %v722 = vld [vmem:[%s4 + $0x58] sm:$0xff]
    %v723 = vld [vmem:[%s4 + $0x60] sm:$0xff]
    %v724 = vld [vmem:[%s4 + $0x68] sm:$0xff]
    %v725 = vld [vmem:[%s4 + $0x70] sm:$0xff]
    %v726 = vld [vmem:[%s4 + $0x78] sm:$0xff]
    %v727 = vld [vmem:[%s4 + $0x80] sm:$0xff]
    %v728 = vld [vmem:[%s4 + $0x88] sm:$0xff]
    %v729 = vld [vmem:[%s4 + $0x90] sm:$0xff]
    %v730 = vld [vmem:[%s4 + $0x98] sm:$0xff]
    %v731 = vld [vmem:[%s4 + $0xa0] sm:$0xff]
    %v732 = vld [vmem:[%s4 + $0xa8] sm:$0xff]
    %v733 = vld [vmem:[%s4 + $0xb0] sm:$0xff]
    %v734 = vld [vmem:[%s4 + $0xb8] sm:$0xff]
    %v735 = vld [vmem:[%s4 + $0xc0] sm:$0xff]
    %v736 = vld [vmem:[%s4 + $0xc8] sm:$0xff]
    %v737 = vld [vmem:[%s4 + $0xd0] sm:$0xff]
    %v738 = vld [vmem:[%s4 + $0xd8] sm:$0xff]
    %v739 = vld [vmem:[%s4 + $0xe0] sm:$0xff]
    %v740 = vld [vmem:[%s4 + $0xe8] sm:$0xff]
    %v741 = vld [vmem:[%s4 + $0xf0] sm:$0xff]
    %v742 = vld [vmem:[%s4 + $0xf8] sm:$0xff]
    %v743 = vld [vmem:[%s4 + $0x100] sm:$0xff]
    %v744 = vld [vmem:[%s4 + $0x108] sm:$0xff]
    %v745 = vld [vmem:[%s4 + $0x110] sm:$0xff]
    %v746 = vld [vmem:[%s4 + $0x118] sm:$0xff]
    %v747 = vld [vmem:[%s4 + $0x120] sm:$0xff]
    %v748 = vld [vmem:[%s4 + $0x128] sm:$0xff]
    %v749 = vld [vmem:[%s4 + $0x130] sm:$0xff]
    %v750 = vld [vmem:[%s4 + $0x138] sm:$0xff]
    %v751 = vld [vmem:[%s4 + $0x140] sm:$0xff]
    %v752 = vld [vmem:[%s4 + $0x148] sm:$0xff]
    %v753 = vld [vmem:[%s4 + $0x150] sm:$0xff]
    %v754 = vld [vmem:[%s4 + $0x158] sm:$0xff]
    %v755 = vld [vmem:[%s4 + $0x160] sm:$0xff]
    %v756 = vld [vmem:[%s4 + $0x168] sm:$0xff]
    %v757 = vld [vmem:[%s4 + $0x170] sm:$0xff]
    %v758 = vld [vmem:[%s4 + $0x178] sm:$0xff]
    %v759 = vld [vmem:[%s4 + $0x180] sm:$0xff]
    %v760 = vld [vmem:[%s4 + $0x188] sm:$0xff]
    %v761 = vld [vmem:[%s4 + $0x190] sm:$0xff]
    %v762 = vld [vmem:[%s4 + $0x198] sm:$0xff]
    %v763 = vld [vmem:[%s4 + $0x1a0] sm:$0xff]
    %v764 = vld [vmem:[%s4 + $0x1a8] sm:$0xff]
    %v765 = vld [vmem:[%s4 + $0x1b0] sm:$0xff]
    %v766 = vld [vmem:[%s4 + $0x1b8] sm:$0xff]
    %v767 = vld [vmem:[%s4 + $0x1c0] sm:$0xff]
    %v768 = vld [vmem:[%s4 + $0x1c8] sm:$0xff]
    %v769 = vld [vmem:[%s4 + $0x1d0] sm:$0xff]
    %v770 = vld [vmem:[%s4 + $0x1d8] sm:$0xff]
    %v771 = vld [vmem:[%s4 + $0x1e0] sm:$0xff]
    %v772 = vld [vmem:[%s4 + $0x1e8] sm:$0xff]
    %v773 = vld [vmem:[%s4 + $0x1f0] sm:$0xff]
    %v774 = vld [vmem:[%s4 + $0x1f8] sm:$0xff]
    %v775 = vld [vmem:[%s4 + $0x200] sm:$0xff]
    %v776 = vld [vmem:[%s4 + $0x208] sm:$0xff]
    %v777 = vld [vmem:[%s4 + $0x210] sm:$0xff]
    %v778 = vld [vmem:[%s4 + $0x218] sm:$0xff]
    %v779 = vld [vmem:[%s4 + $0x220] sm:$0xff]
    %v780 = vld [vmem:[%s4 + $0x228] sm:$0xff]
    %v781 = vld [vmem:[%s4 + $0x230] sm:$0xff]
    %v782 = vld [vmem:[%s4 + $0x238] sm:$0xff]
    %v783 = vld [vmem:[%s4 + $0x240] sm:$0xff]
    %v784 = vld [vmem:[%s4 + $0x248] sm:$0xff]
    %v785 = vld [vmem:[%s4 + $0x250] sm:$0xff]
    %v786 = vld [vmem:[%s4 + $0x258] sm:$0xff]
    %v787 = vld [vmem:[%s4 + $0x260] sm:$0xff]
    %v788 = vld [vmem:[%s4 + $0x268] sm:$0xff]
    %v789 = vld [vmem:[%s4 + $0x270] sm:$0xff]
    %v790 = vld [vmem:[%s4 + $0x278] sm:$0xff]
    %v791 = vld [vmem:[%s4 + $0x280] sm:$0xff]
    %v792 = vld [vmem:[%s4 + $0x288] sm:$0xff]
    %v793 = vld [vmem:[%s4 + $0x290] sm:$0xff]
    %v794 = vld [vmem:[%s4 + $0x298] sm:$0xff]
    %v795 = vld [vmem:[%s4 + $0x2a0] sm:$0xff]
    %v796 = vld [vmem:[%s4 + $0x2a8] sm:$0xff]
    %v797 = vld [vmem:[%s4 + $0x2b0] sm:$0xff]
    %v798 = vld [vmem:[%s4 + $0x2b8] sm:$0xff]
    %v799 = vld [vmem:[%s4 + $0x2c0] sm:$0xff]
    %v800 = vld [vmem:[%s4 + $0x2c8] sm:$0xff]
    %v801 = vld [vmem:[%s4 + $0x2d0] sm:$0xff]
    %v802 = vld [vmem:[%s4 + $0x2d8] sm:$0xff]
    %v803 = vld [vmem:[%s4 + $0x2e0] sm:$0xff]
    %v804 = vld [vmem:[%s4 + $0x2e8] sm:$0xff]
    %v805 = vld [vmem:[%s4 + $0x2f0] sm:$0xff]
    %v806 = vld [vmem:[%s4 + $0x2f8] sm:$0xff]
    %v807 = vld [vmem:[%s4 + $0x300] sm:$0xff]
    %v808 = vld [vmem:[%s4 + $0x308] sm:$0xff]
    %v809 = vld [vmem:[%s4 + $0x310] sm:$0xff]
    %v810 = vld [vmem:[%s4 + $0x318] sm:$0xff]
    %v811 = vld [vmem:[%s4 + $0x320] sm:$0xff]
    %v812 = vld [vmem:[%s4 + $0x328] sm:$0xff]
    %v813 = vld [vmem:[%s4 + $0x330] sm:$0xff]
    %v814 = vld [vmem:[%s4 + $0x338] sm:$0xff]
    %v815 = vld [vmem:[%s4 + $0x340] sm:$0xff]
    %v816 = vld [vmem:[%s4 + $0x348] sm:$0xff]
    %v817 = vld [vmem:[%s4 + $0x350] sm:$0xff]
    %v818 = vld [vmem:[%s4 + $0x358] sm:$0xff]
    %v819 = vld [vmem:[%s4 + $0x360] sm:$0xff]
    %v820 = vld [vmem:[%s4 + $0x368] sm:$0xff]
    %v821 = vld [vmem:[%s4 + $0x370] sm:$0xff]
    %v822 = vld [vmem:[%s4 + $0x378] sm:$0xff]
    %v823 = vld [vmem:[%s4 + $0x380] sm:$0xff]
    %v824 = vld [vmem:[%s4 + $0x388] sm:$0xff]
    %v825 = vld [vmem:[%s4 + $0x390] sm:$0xff]
    %v826 = vld [vmem:[%s4 + $0x398] sm:$0xff]
    %v827 = vld [vmem:[%s4 + $0x3a0] sm:$0xff]
    %v828 = vld [vmem:[%s4 + $0x3a8] sm:$0xff]
    %v829 = vld [vmem:[%s4 + $0x3b0] sm:$0xff]
    %v830 = vld [vmem:[%s4 + $0x3b8] sm:$0xff]
    %v831 = vld [vmem:[%s4 + $0x3c0] sm:$0xff]
    %v832 = vld [vmem:[%s4 + $0x3c8] sm:$0xff]
    %v833 = vld [vmem:[%s4 + $0x3d0] sm:$0xff]
    %v834 = vld [vmem:[%s4 + $0x3d8] sm:$0xff]
    %v835 = vld [vmem:[%s4 + $0x3e0] sm:$0xff]
    %v836 = vld [vmem:[%s4 + $0x3e8] sm:$0xff]
    %v837 = vld [vmem:[%s4 + $0x3f0] sm:$0xff]
    %v838 = vld [vmem:[%s4 + $0x3f8] sm:$0xff]
    %vm839 = vcmask 523264
    %v841 = vsel %vm839, %v667, 0
    %843 = vmatpush.msra.mxu0 0.0
    %844 = vmatpush.msra.mxu0 0.0
    %845 = vmatpush.msra.mxu0 0.0
    %846 = vmatpush.msra.mxu0 0.0
    %847 = vmatpush.msra.mxu0 0.0
    %848 = vmatpush.msra.mxu0 0.0
    %849 = vmatpush.msra.mxu0 0.0
    %850 = vmatpush.msra.mxu0 0.0
    %851 = vmatpush.msra.mxu0 %v726
    %852 = vmatpush.msra.mxu0 %v725
    %853 = vmatpush.msra.mxu0 %v724
    %854 = vmatpush.msra.mxu0 %v723
    %855 = vmatpush.msra.mxu0 %v722
    %856 = vmatpush.msra.mxu0 %v721
    %857 = vmatpush.msra.mxu0 %v720
    %858 = vmatpush.msra.mxu0 %v719
    %859 = vmatmul.f32.gmra.mxu0 %v841
    %v860 = vpop.f32.mrf.mxu0
    %v861 = vadd.f32 0.0, %v860
    %862 = vdwg.mxu0
    %v864 = vsel %vm839, %v673, 0
    %866 = vmatpush.msra.mxu0 0.0
    %867 = vmatpush.msra.mxu0 0.0
    %868 = vmatpush.msra.mxu0 0.0
    %869 = vmatpush.msra.mxu0 0.0
    %870 = vmatpush.msra.mxu0 0.0
    %871 = vmatpush.msra.mxu0 0.0
    %872 = vmatpush.msra.mxu0 0.0
    %873 = vmatpush.msra.mxu0 0.0
    %874 = vmatpush.msra.mxu0 %v742
    %875 = vmatpush.msra.mxu0 %v741
    %876 = vmatpush.msra.mxu0 %v740
    %877 = vmatpush.msra.mxu0 %v739
    %878 = vmatpush.msra.mxu0 %v738
    %879 = vmatpush.msra.mxu0 %v737
    %880 = vmatpush.msra.mxu0 %v736
    %881 = vmatpush.msra.mxu0 %v735
    %882 = vmatmul.f32.gmra.mxu0 %v864
    %v883 = vpop.f32.mrf.mxu0
    %v884 = vadd.f32 0.0, %v883
    %885 = vdwg.mxu0
    %v887 = vsel %vm839, %v679, 0
    %889 = vmatpush.msra.mxu0 0.0
    %890 = vmatpush.msra.mxu0 0.0
    %891 = vmatpush.msra.mxu0 0.0
    %892 = vmatpush.msra.mxu0 0.0
    %893 = vmatpush.msra.mxu0 0.0
    %894 = vmatpush.msra.mxu0 0.0
    %895 = vmatpush.msra.mxu0 0.0
    %896 = vmatpush.msra.mxu0 0.0
    %897 = vmatpush.msra.mxu0 %v758
    %898 = vmatpush.msra.mxu0 %v757
    %899 = vmatpush.msra.mxu0 %v756
    %900 = vmatpush.msra.mxu0 %v755
    %901 = vmatpush.msra.mxu0 %v754
    %902 = vmatpush.msra.mxu0 %v753
    %903 = vmatpush.msra.mxu0 %v752
    %904 = vmatpush.msra.mxu0 %v751
    %905 = vmatmul.f32.gmra.mxu0 %v887
    %v906 = vpop.f32.mrf.mxu0
    %v907 = vadd.f32 0.0, %v906
    %908 = vdwg.mxu0
    %v910 = vsel %vm839, %v685, 0
    %912 = vmatpush.msra.mxu0 0.0
    %913 = vmatpush.msra.mxu0 0.0
    %914 = vmatpush.msra.mxu0 0.0
    %915 = vmatpush.msra.mxu0 0.0
    %916 = vmatpush.msra.mxu0 0.0
    %917 = vmatpush.msra.mxu0 0.0
    %918 = vmatpush.msra.mxu0 0.0
    %919 = vmatpush.msra.mxu0 0.0
    %920 = vmatpush.msra.mxu0 %v774
    %921 = vmatpush.msra.mxu0 %v773
    %922 = vmatpush.msra.mxu0 %v772
    %923 = vmatpush.msra.mxu0 %v771
    %924 = vmatpush.msra.mxu0 %v770
    %925 = vmatpush.msra.mxu0 %v769
    %926 = vmatpush.msra.mxu0 %v768
    %927 = vmatpush.msra.mxu0 %v767
    %928 = vmatmul.f32.gmra.mxu0 %v910
    %v929 = vpop.f32.mrf.mxu0
    %v930 = vadd.f32 0.0, %v929
    %931 = vdwg.mxu0
    %v933 = vsel %vm839, %v691, 0
    %935 = vmatpush.msra.mxu0 0.0
    %936 = vmatpush.msra.mxu0 0.0
    %937 = vmatpush.msra.mxu0 0.0
    %938 = vmatpush.msra.mxu0 0.0
    %939 = vmatpush.msra.mxu0 0.0
    %940 = vmatpush.msra.mxu0 0.0
    %941 = vmatpush.msra.mxu0 0.0
    %942 = vmatpush.msra.mxu0 0.0
    %943 = vmatpush.msra.mxu0 %v790
    %944 = vmatpush.msra.mxu0 %v789
    %945 = vmatpush.msra.mxu0 %v788
    %946 = vmatpush.msra.mxu0 %v787
    %947 = vmatpush.msra.mxu0 %v786
    %948 = vmatpush.msra.mxu0 %v785
    %949 = vmatpush.msra.mxu0 %v784
    %950 = vmatpush.msra.mxu0 %v783
    %951 = vmatmul.f32.gmra.mxu0 %v933
    %v952 = vpop.f32.mrf.mxu0
    %v953 = vadd.f32 0.0, %v952
    %954 = vdwg.mxu0
    %v956 = vsel %vm839, %v697, 0
    %958 = vmatpush.msra.mxu0 0.0
    %959 = vmatpush.msra.mxu0 0.0
    %960 = vmatpush.msra.mxu0 0.0
    %961 = vmatpush.msra.mxu0 0.0
    %962 = vmatpush.msra.mxu0 0.0
    %963 = vmatpush.msra.mxu0 0.0
    %964 = vmatpush.msra.mxu0 0.0
    %965 = vmatpush.msra.mxu0 0.0
    %966 = vmatpush.msra.mxu0 %v806
    %967 = vmatpush.msra.mxu0 %v805
    %968 = vmatpush.msra.mxu0 %v804
    %969 = vmatpush.msra.mxu0 %v803
    %970 = vmatpush.msra.mxu0 %v802
    %971 = vmatpush.msra.mxu0 %v801
    %972 = vmatpush.msra.mxu0 %v800
    %973 = vmatpush.msra.mxu0 %v799
    %974 = vmatmul.f32.gmra.mxu0 %v956
    %v975 = vpop.f32.mrf.mxu0
    %v976 = vadd.f32 0.0, %v975
    %977 = vdwg.mxu0
    %v979 = vsel %vm839, %v703, 0
    %981 = vmatpush.msra.mxu0 0.0
    %982 = vmatpush.msra.mxu0 0.0
    %983 = vmatpush.msra.mxu0 0.0
    %984 = vmatpush.msra.mxu0 0.0
    %985 = vmatpush.msra.mxu0 0.0
    %986 = vmatpush.msra.mxu0 0.0
    %987 = vmatpush.msra.mxu0 0.0
    %988 = vmatpush.msra.mxu0 0.0
    %989 = vmatpush.msra.mxu0 %v822
    %990 = vmatpush.msra.mxu0 %v821
    %991 = vmatpush.msra.mxu0 %v820
    %992 = vmatpush.msra.mxu0 %v819
    %993 = vmatpush.msra.mxu0 %v818
    %994 = vmatpush.msra.mxu0 %v817
    %995 = vmatpush.msra.mxu0 %v816
    %996 = vmatpush.msra.mxu0 %v815
    %997 = vmatmul.f32.gmra.mxu0 %v979
    %v998 = vpop.f32.mrf.mxu0
    %v999 = vadd.f32 0.0, %v998
    %1000 = vdwg.mxu0
    %v1002 = vsel %vm839, %v709, 0
    %1004 = vmatpush.msra.mxu0 0.0
    %1005 = vmatpush.msra.mxu0 0.0
    %1006 = vmatpush.msra.mxu0 0.0
    %1007 = vmatpush.msra.mxu0 0.0
    %1008 = vmatpush.msra.mxu0 0.0
    %1009 = vmatpush.msra.mxu0 0.0
    %1010 = vmatpush.msra.mxu0 0.0
    %1011 = vmatpush.msra.mxu0 0.0
    %1012 = vmatpush.msra.mxu0 %v838
    %1013 = vmatpush.msra.mxu0 %v837
    %1014 = vmatpush.msra.mxu0 %v836
    %1015 = vmatpush.msra.mxu0 %v835
    %1016 = vmatpush.msra.mxu0 %v834
    %1017 = vmatpush.msra.mxu0 %v833
    %1018 = vmatpush.msra.mxu0 %v832
    %1019 = vmatpush.msra.mxu0 %v831
    %1020 = vmatmul.f32.gmra.mxu0 %v1002
    %v1021 = vpop.f32.mrf.mxu0
    %v1022 = vadd.f32 0.0, %v1021
    %1023 = vdwg.mxu0
    %v1025 = vsel %vm839, %v664, 0
    %1027 = vmatpush.msra.mxu0 0.0
    %1028 = vmatpush.msra.mxu0 0.0
    %1029 = vmatpush.msra.mxu0 0.0
    %1030 = vmatpush.msra.mxu0 0.0
    %1031 = vmatpush.msra.mxu0 0.0
    %1032 = vmatpush.msra.mxu0 0.0
    %1033 = vmatpush.msra.mxu0 0.0
    %1034 = vmatpush.msra.mxu0 0.0
    %1035 = vmatpush.msra.mxu0 %v718
    %1036 = vmatpush.msra.mxu0 %v717
    %1037 = vmatpush.msra.mxu0 %v716
    %1038 = vmatpush.msra.mxu0 %v715
    %1039 = vmatpush.msra.mxu0 %v714
    %1040 = vmatpush.msra.mxu0 %v713
    %1041 = vmatpush.msra.mxu0 %v712
    %1042 = vmatpush.msra.mxu0 %v711
    %1043 = vmatmul.f32.gmra.mxu0 %v1025
    %v1044 = vpop.f32.mrf.mxu0
    %v1045 = vadd.f32 %v861, %v1044
    %1046 = vdwg.mxu0
    %v1048 = vsel %vm839, %v670, 0
    %1050 = vmatpush.msra.mxu0 0.0
    %1051 = vmatpush.msra.mxu0 0.0
    %1052 = vmatpush.msra.mxu0 0.0
    %1053 = vmatpush.msra.mxu0 0.0
    %1054 = vmatpush.msra.mxu0 0.0
    %1055 = vmatpush.msra.mxu0 0.0
    %1056 = vmatpush.msra.mxu0 0.0
    %1057 = vmatpush.msra.mxu0 0.0
    %1058 = vmatpush.msra.mxu0 %v734
    %1059 = vmatpush.msra.mxu0 %v733
    %1060 = vmatpush.msra.mxu0 %v732
    %1061 = vmatpush.msra.mxu0 %v731
    %1062 = vmatpush.msra.mxu0 %v730
    %1063 = vmatpush.msra.mxu0 %v729
    %1064 = vmatpush.msra.mxu0 %v728
    %1065 = vmatpush.msra.mxu0 %v727
    %1066 = vmatmul.f32.gmra.mxu0 %v1048
    %v1067 = vpop.f32.mrf.mxu0
    %v1068 = vadd.f32 %v884, %v1067
    %1069 = vdwg.mxu0
    %v1071 = vsel %vm839, %v676, 0
    %1073 = vmatpush.msra.mxu0 0.0
    %1074 = vmatpush.msra.mxu0 0.0
    %1075 = vmatpush.msra.mxu0 0.0
    %1076 = vmatpush.msra.mxu0 0.0
    %1077 = vmatpush.msra.mxu0 0.0
    %1078 = vmatpush.msra.mxu0 0.0
    %1079 = vmatpush.msra.mxu0 0.0
    %1080 = vmatpush.msra.mxu0 0.0
    %1081 = vmatpush.msra.mxu0 %v750
    %1082 = vmatpush.msra.mxu0 %v749
    %1083 = vmatpush.msra.mxu0 %v748
    %1084 = vmatpush.msra.mxu0 %v747
    %1085 = vmatpush.msra.mxu0 %v746
    %1086 = vmatpush.msra.mxu0 %v745
    %1087 = vmatpush.msra.mxu0 %v744
    %1088 = vmatpush.msra.mxu0 %v743
    %1089 = vmatmul.f32.gmra.mxu0 %v1071
    %v1090 = vpop.f32.mrf.mxu0
    %v1091 = vadd.f32 %v907, %v1090
    %1092 = vdwg.mxu0
    %v1094 = vsel %vm839, %v682, 0
    %1096 = vmatpush.msra.mxu0 0.0
    %1097 = vmatpush.msra.mxu0 0.0
    %1098 = vmatpush.msra.mxu0 0.0
    %1099 = vmatpush.msra.mxu0 0.0
    %1100 = vmatpush.msra.mxu0 0.0
    %1101 = vmatpush.msra.mxu0 0.0
    %1102 = vmatpush.msra.mxu0 0.0
    %1103 = vmatpush.msra.mxu0 0.0
    %1104 = vmatpush.msra.mxu0 %v766
    %1105 = vmatpush.msra.mxu0 %v765
    %1106 = vmatpush.msra.mxu0 %v764
    %1107 = vmatpush.msra.mxu0 %v763
    %1108 = vmatpush.msra.mxu0 %v762
    %1109 = vmatpush.msra.mxu0 %v761
    %1110 = vmatpush.msra.mxu0 %v760
    %1111 = vmatpush.msra.mxu0 %v759
    %1112 = vmatmul.f32.gmra.mxu0 %v1094
    %v1113 = vpop.f32.mrf.mxu0
    %v1114 = vadd.f32 %v930, %v1113
    %1115 = vdwg.mxu0
    %v1117 = vsel %vm839, %v688, 0
    %1119 = vmatpush.msra.mxu0 0.0
    %1120 = vmatpush.msra.mxu0 0.0
    %1121 = vmatpush.msra.mxu0 0.0
    %1122 = vmatpush.msra.mxu0 0.0
    %1123 = vmatpush.msra.mxu0 0.0
    %1124 = vmatpush.msra.mxu0 0.0
    %1125 = vmatpush.msra.mxu0 0.0
    %1126 = vmatpush.msra.mxu0 0.0
    %1127 = vmatpush.msra.mxu0 %v782
    %1128 = vmatpush.msra.mxu0 %v781
    %1129 = vmatpush.msra.mxu0 %v780
    %1130 = vmatpush.msra.mxu0 %v779
    %1131 = vmatpush.msra.mxu0 %v778
    %1132 = vmatpush.msra.mxu0 %v777
    %1133 = vmatpush.msra.mxu0 %v776
    %1134 = vmatpush.msra.mxu0 %v775
    %1135 = vmatmul.f32.gmra.mxu0 %v1117
    %v1136 = vpop.f32.mrf.mxu0
    %v1137 = vadd.f32 %v953, %v1136
    %1138 = vdwg.mxu0
    %v1140 = vsel %vm839, %v694, 0
    %1142 = vmatpush.msra.mxu0 0.0
    %1143 = vmatpush.msra.mxu0 0.0
    %1144 = vmatpush.msra.mxu0 0.0
    %1145 = vmatpush.msra.mxu0 0.0
    %1146 = vmatpush.msra.mxu0 0.0
    %1147 = vmatpush.msra.mxu0 0.0
    %1148 = vmatpush.msra.mxu0 0.0
    %1149 = vmatpush.msra.mxu0 0.0
    %1150 = vmatpush.msra.mxu0 %v798
    %1151 = vmatpush.msra.mxu0 %v797
    %1152 = vmatpush.msra.mxu0 %v796
    %1153 = vmatpush.msra.mxu0 %v795
    %1154 = vmatpush.msra.mxu0 %v794
    %1155 = vmatpush.msra.mxu0 %v793
    %1156 = vmatpush.msra.mxu0 %v792
    %1157 = vmatpush.msra.mxu0 %v791
    %1158 = vmatmul.f32.gmra.mxu0 %v1140
    %v1159 = vpop.f32.mrf.mxu0
    %v1160 = vadd.f32 %v976, %v1159
    %1161 = vdwg.mxu0
    %v1163 = vsel %vm839, %v700, 0
    %1165 = vmatpush.msra.mxu0 0.0
    %1166 = vmatpush.msra.mxu0 0.0
    %1167 = vmatpush.msra.mxu0 0.0
    %1168 = vmatpush.msra.mxu0 0.0
    %1169 = vmatpush.msra.mxu0 0.0
    %1170 = vmatpush.msra.mxu0 0.0
    %1171 = vmatpush.msra.mxu0 0.0
    %1172 = vmatpush.msra.mxu0 0.0
    %1173 = vmatpush.msra.mxu0 %v814
    %1174 = vmatpush.msra.mxu0 %v813
    %1175 = vmatpush.msra.mxu0 %v812
    %1176 = vmatpush.msra.mxu0 %v811
    %1177 = vmatpush.msra.mxu0 %v810
    %1178 = vmatpush.msra.mxu0 %v809
    %1179 = vmatpush.msra.mxu0 %v808
    %1180 = vmatpush.msra.mxu0 %v807
    %1181 = vmatmul.f32.gmra.mxu0 %v1163
    %v1182 = vpop.f32.mrf.mxu0
    %v1183 = vadd.f32 %v999, %v1182
    %1184 = vdwg.mxu0
    %v1186 = vsel %vm839, %v706, 0
    %1188 = vmatpush.msra.mxu0 0.0
    %1189 = vmatpush.msra.mxu0 0.0
    %1190 = vmatpush.msra.mxu0 0.0
    %1191 = vmatpush.msra.mxu0 0.0
    %1192 = vmatpush.msra.mxu0 0.0
    %1193 = vmatpush.msra.mxu0 0.0
    %1194 = vmatpush.msra.mxu0 0.0
    %1195 = vmatpush.msra.mxu0 0.0
    %1196 = vmatpush.msra.mxu0 %v830
    %1197 = vmatpush.msra.mxu0 %v829
    %1198 = vmatpush.msra.mxu0 %v828
    %1199 = vmatpush.msra.mxu0 %v827
    %1200 = vmatpush.msra.mxu0 %v826
    %1201 = vmatpush.msra.mxu0 %v825
    %1202 = vmatpush.msra.mxu0 %v824
    %1203 = vmatpush.msra.mxu0 %v823
    %1204 = vmatmul.f32.gmra.mxu0 %v1186
    %v1205 = vpop.f32.mrf.mxu0
    %v1206 = vadd.f32 %v1022, %v1205
    %1207 = vdwg.mxu0
    %v1208 = vadd.f32 %v1045, %v1068
    %v1209 = vadd.f32 %v1091, %v1114
    %v1210 = vadd.f32 %v1137, %v1160
    %v1211 = vadd.f32 %v1183, %v1206
    %v1212 = vadd.f32 %v1208, %v1209
    %v1213 = vadd.f32 %v1210, %v1211
    %v1214 = vadd.f32 %v1212, %v1213
    %v1215 = vld [vmem:[%s5] sm:$0x1]
    %v1217 = vperm.slane %v1215, 0
    %v1219 = vadd.f32 %v1214, %v1217
    %vm1220 = vcmask 261120
    %v1221 = vsel %vm1220, %v1219, 0.0
    %1222 = vadd.xlane.f32.xlu0 %v1221
    %v1223 = vpop.xlane.xlu0 %1222
    %v1224 = vrcp.pop 32.0
    %v1225 = vmul.f32 32.0, %v1224
    %v1226 = vsub.f32 1.0, %v1225
    %v1227 = vmul.f32 %v1224, %v1226
    %v1228 = vadd.f32 %v1224, %v1227
    %vm1229 = vweird.f32 %v1224
    %v1230 = vsel %vm1229, %v1224, %v1228
    %v1231 = vmul.f32 %v1223, %v1230
    %v1232 = vsub.f32 %v1219, %v1231
    %v1233 = vmul.f32 %v1232, %v1232
    %v1234 = vsel %vm1220, %v1233, 0.0
    %1235 = vadd.xlane.f32.xlu0 %v1234
    %v1236 = vpop.xlane.xlu0 %1235
    %v1237 = vmul.f32 %v1236, %v1230
    %v1238 = vadd.f32 %v1237, 1e-12
    %v1239 = vrsqrt.pop %v1238
    %v1240 = vmul.f32 %v1239, %v1238
    %v1241 = vmul.f32 %v1240, %v1239
    %v1242 = vmul.f32 0.5, %v1241
    %v1243 = vsub.f32 1.5, %v1242
    %v1244 = vmul.f32 %v1239, %v1243
    %vm1245 = vweird.f32 %v1238
    %vm1246 = vweird.f32 %v1239
    %vm1247 = vmor %vm1245, %vm1246
    %v1248 = vsel %vm1247, %v1239, %v1244
    %v1249 = vmul.f32 %v1232, %v1248
    %v1250 = vld [vmem:[%s6] sm:$0x1]
    %v1252 = vperm.slane %v1250, 0
    %v1254 = vmul.f32 %v1249, %v1252
    %v1255 = vld [vmem:[%s7] sm:$0x1]
    %v1257 = vperm.slane %v1255, 0
    %v1259 = vadd.f32 %v1254, %v1257
    %1260 = vst.msk [vmem:[#allocation2] sm:$0xff] %vm1220, %v1259
    // Predicated region
    $region34: #{patch_embedding.1} parent=1 // pred_check
      _
    $region35: #{patch_embedding.1} parent=1 // pred_check_branch
      %1262 = sbr.rel (0) target = $region37
    $region36: #{patch_embedding.1} parent=1 // pred_region
      %1264 = vsyncadd [#allocation3], 0
      %s1266 = sshll.u32 [#allocation2], 4
      %s1267 = int_to_ptr.vmem [resolvable:$true] %s1266
      %s1268 = sshll.u32 %s8, 4
      %s1269 = int_to_ptr.hbm [resolvable:$true] %s1268
      %1271 = dma.vmem_to_hbm [thread:$0]  %s1267, 128, %s1269, [#allocation3]
    $region37: #{patch_embedding.1} parent=1 // pred_fallthru
      _
    // Predicated region
    $region38: #{patch_embedding.1} parent=1 // pred_check
      _
    $region39: #{patch_embedding.1} parent=1 // pred_check_branch
      %1273 = sbr.rel (0) target = $region41
    $region40: #{patch_embedding.1} parent=1 // pred_region
      %1275 = dma.done [#allocation3], 128
    $region41: #{patch_embedding.1} parent=1 // pred_fallthru
      _
    %1276 = vsyncpa [#allocation3], 1

</llo_original>
